<compile_context>
chip_gen: v6e
topology: v6e:2x2x1
jax: 0.10.0
libtpu: 0.0.40
codegen_flags: <defaults>
</compile_context>

<pallas_src>
import jax
import jax.numpy as jnp
from jax import lax
from jax.experimental import pallas as pl
from jax.experimental.pallas import tpu as pltpu

HIDDEN = 256   # fc1 / fc2 width (from the torch module)
N_PAD = 128    # fc3 output padded up to a full lane width
DROP_P = 0.5   # F.dropout default; the reference module always applies it
TB = 256       # batch-tile rows per grid step (raise to 512-1024 for large B)


def _hash_u32(x):
    """32-bit avalanche finalizer (Wellons' lowbias32), wrapping uint32 math."""
    x = x ^ (x >> 16)
    x = x * jnp.uint32(0x7FEB352D)
    x = x ^ (x >> 15)
    x = x * jnp.uint32(0x846CA68B)
    x = x ^ (x >> 16)
    return x


def lrnet_kernel(seed_ref, x_ref, w1_ref, b1_ref, w2_ref, b2_ref, w3_ref,
                 b3_ref, o_ref):
    tb = x_ref.shape[0]
    row0 = pl.program_id(0) * tb                       # global row offset of this tile
    seed_mix = seed_ref[0].astype(jnp.uint32) * jnp.uint32(0x9E3779B9)

    keep_thresh = jnp.uint32(min(2 ** 32 - 1, int(round((1.0 - DROP_P) * 2.0 ** 32))))
    scale = jnp.float32(1.0 / (1.0 - DROP_P))

    def dropout(h, layer):
        # Unique counter per (global row, column, dropout layer), mixed with seed.
        rows = lax.broadcasted_iota(jnp.int32, h.shape, 0) + row0
        cols = lax.broadcasted_iota(jnp.int32, h.shape, 1)
        ctr = rows * (2 * HIDDEN) + 2 * cols + layer   # non-negative int32
        bits = _hash_u32(ctr.astype(jnp.uint32) + seed_mix)
        return jnp.where(bits < keep_thresh, h * scale, jnp.float32(0.0))

    x = x_ref[...]                                     # bf16 (tb, in_dim)

    # fc1 + ReLU + dropout (bf16 operands, f32 MXU accumulate)
    h = jnp.dot(x, w1_ref[...], preferred_element_type=jnp.float32) + b1_ref[...]
    h = jnp.maximum(h, 0.0)
    h = dropout(h, 0)

    # fc2 + ReLU + dropout
    h = jnp.dot(h.astype(w2_ref.dtype), w2_ref[...],
                preferred_element_type=jnp.float32) + b2_ref[...]
    h = jnp.maximum(h, 0.0)
    h = dropout(h, 1)

    # fc3 (lane-dense padded output; real logits live in the first n_class cols)
    out = jnp.dot(h.astype(w3_ref.dtype), w3_ref[...],
                  preferred_element_type=jnp.float32) + b3_ref[...]
    o_ref[...] = out.astype(o_ref.dtype)


def init_params(key, in_dim, n_class=2, dtype=jnp.float32):
    """torch.nn.Linear-style init (U(-k, k), k = 1/sqrt(fan_in)); weights are
    stored as (in_features, out_features)."""
    def linear(key, fan_in, fan_out):
        kw, kb = jax.random.split(key)
        bound = 1.0 / jnp.sqrt(jnp.asarray(fan_in, jnp.float32))
        w = jax.random.uniform(kw, (fan_in, fan_out), dtype, -bound, bound)
        b = jax.random.uniform(kb, (1, fan_out), dtype, -bound, bound)
        return w, b

    k1, k2, k3 = jax.random.split(key, 3)
    w1, b1 = linear(k1, in_dim, HIDDEN)
    w2, b2 = linear(k2, HIDDEN, HIDDEN)
    w3, b3 = linear(k3, HIDDEN, n_class)
    return dict(w1=w1, b1=b1, w2=w2, b2=b2, w3=w3, b3=b3)


def lrnet_forward(x, params, seed=0, tb=TB):
    B, in_dim = x.shape
    n_class = params["w3"].shape[1]
    n_out = max(N_PAD, ((n_class + 127) // 128) * 128)   # lane-dense padded width

    # Pad batch to a multiple of the tile, cast matmul operands to bf16.
    b_pad = ((B + tb - 1) // tb) * tb
    x_p = jnp.pad(x, ((0, b_pad - B), (0, 0))).astype(jnp.bfloat16)
    w1 = params["w1"].astype(jnp.bfloat16)
    w2 = params["w2"].astype(jnp.bfloat16)
    w3 = jnp.pad(params["w3"], ((0, 0), (0, n_out - n_class))).astype(jnp.bfloat16)
    b1 = params["b1"].astype(jnp.float32)
    b2 = params["b2"].astype(jnp.float32)
    b3 = jnp.pad(params["b3"], ((0, 0), (0, n_out - n_class))).astype(jnp.float32)
    seed_arr = jnp.array([seed], dtype=jnp.int32)

    grid = (b_pad // tb,)
    grid_spec = pltpu.PrefetchScalarGridSpec(
        num_scalar_prefetch=1,          # seed lives in SMEM, visible to index_maps
        grid=grid,
        in_specs=[
            pl.BlockSpec((tb, in_dim), lambda i, s: (i, 0)),        # x tile (pipelined)
            pl.BlockSpec((in_dim, HIDDEN), lambda i, s: (0, 0)),    # w1 (resident)
            pl.BlockSpec((1, HIDDEN), lambda i, s: (0, 0)),         # b1
            pl.BlockSpec((HIDDEN, HIDDEN), lambda i, s: (0, 0)),    # w2
            pl.BlockSpec((1, HIDDEN), lambda i, s: (0, 0)),         # b2
            pl.BlockSpec((HIDDEN, n_out), lambda i, s: (0, 0)),     # w3 (padded)
            pl.BlockSpec((1, n_out), lambda i, s: (0, 0)),          # b3 (padded)
        ],
        out_specs=pl.BlockSpec((tb, n_out), lambda i, s: (i, 0)),
    )

    flops = 2 * b_pad * (in_dim * HIDDEN + HIDDEN * HIDDEN + HIDDEN * n_out)
    bytes_accessed = int(
        x_p.size * 2 + (w1.size + w2.size + w3.size) * 2
        + (b1.size + b2.size + b3.size) * 4 + b_pad * n_out * 4)

    out = pl.pallas_call(
        lrnet_kernel,
        out_shape=jax.ShapeDtypeStruct((b_pad, n_out), jnp.float32),
        grid_spec=grid_spec,
        compiler_params=pltpu.CompilerParams(
            dimension_semantics=("parallel",),        # 2x on v7x's two TCs
            vmem_limit_bytes=16 * 1024 * 1024,        # safe on v7x's smaller VMEM
        ),
        cost_estimate=pl.CostEstimate(
            flops=flops, transcendentals=0, bytes_accessed=bytes_accessed),
    )(seed_arr, x_p, w1, b1, w2, b2, w3, b3)

    out = out[:B, :n_class]
    # torch's .squeeze(1): drops dim 1 only when it has size 1 (e.g. n_class=1).
    if out.shape[1] == 1:
        out = out[:, 0]
    return out


if __name__ == "__main__":
    key = jax.random.PRNGKey(0)
    kx, kp = jax.random.split(key)

    B, in_dim, n_class = 8, 32, 2
    x = jax.random.normal(kx, (B, in_dim), dtype=jnp.float32)
    params = init_params(kp, in_dim, n_class)

    out = lrnet_forward(x, params, seed=0)
    out = jax.block_until_ready(out)

    assert out.shape == (B, n_class), out.shape
    assert bool(jnp.all(jnp.isfinite(out)))
    print("KERNEL_OK")
</pallas_src>

<mosaic_0001>
module attributes {stable_mosaic.version = 11 : i64} {
  func.func @lrnet_kernel(%arg0: i32, %arg1: memref<1xi32, #tpu.memory_space<smem>>, %arg2: memref<256x32xbf16, #tpu.memory_space<vmem>>, %arg3: memref<32x256xbf16, #tpu.memory_space<vmem>>, %arg4: memref<1x256xf32, #tpu.memory_space<vmem>>, %arg5: memref<256x256xbf16, #tpu.memory_space<vmem>>, %arg6: memref<1x256xf32, #tpu.memory_space<vmem>>, %arg7: memref<256x128xbf16, #tpu.memory_space<vmem>>, %arg8: memref<1x128xf32, #tpu.memory_space<vmem>>, %arg9: memref<256x128xf32, #tpu.memory_space<vmem>>) attributes {dimension_semantics = [#tpu.dimension_semantics<parallel>], iteration_bounds = array<i64: 1>, scalar_prefetch = 1 : i64, scratch_operands = 0 : i64, tpu.core_type = #tpu.core_type<tc>, window_params = [{transform_indices = @transform_0, window_bounds = array<i64: 256, 32>}, {pipeline_mode = #tpu.pipeline_mode<synchronous>, transform_indices = @transform_1, window_bounds = array<i64: 32, 256>}, {pipeline_mode = #tpu.pipeline_mode<synchronous>, transform_indices = @transform_2, window_bounds = array<i64: 1, 256>}, {pipeline_mode = #tpu.pipeline_mode<synchronous>, transform_indices = @transform_3, window_bounds = array<i64: 256, 256>}, {pipeline_mode = #tpu.pipeline_mode<synchronous>, transform_indices = @transform_4, window_bounds = array<i64: 1, 256>}, {pipeline_mode = #tpu.pipeline_mode<synchronous>, transform_indices = @transform_5, window_bounds = array<i64: 256, 128>}, {pipeline_mode = #tpu.pipeline_mode<synchronous>, transform_indices = @transform_6, window_bounds = array<i64: 1, 128>}, {transform_indices = @transform_7, window_bounds = array<i64: 256, 128>}]} {
    %c256_i32 = arith.constant 256 : i32
    %0 = arith.muli %arg0, %c256_i32 : i32
    %c0 = arith.constant 0 : index
    %1 = memref.load %arg1[%c0] : memref<1xi32, #tpu.memory_space<smem>>
    %c-1640531527_i32 = arith.constant -1640531527 : i32
    %2 = arith.muli %1, %c-1640531527_i32 : i32
    %c0_0 = arith.constant 0 : index
    %c0_1 = arith.constant 0 : index
    %3 = vector.load %arg2[%c0_0, %c0_1] : memref<256x32xbf16, #tpu.memory_space<vmem>>, vector<256x32xbf16>
    %c0_2 = arith.constant 0 : index
    %c0_3 = arith.constant 0 : index
    %4 = vector.load %arg3[%c0_2, %c0_3] : memref<32x256xbf16, #tpu.memory_space<vmem>>, vector<32x256xbf16>
    %cst = arith.constant dense<0.000000e+00> : vector<256x256xf32>
    %5 = tpu.matmul %3, %4, %cst {dimension_numbers = #tpu.dot_dimension_numbers<[1], [0], [0], [1], [0, 0, 1, 1], [], []>} : vector<256x32xbf16>, vector<32x256xbf16>, vector<256x256xf32> -> vector<256x256xf32>
    %c0_4 = arith.constant 0 : index
    %c0_5 = arith.constant 0 : index
    %6 = vector.load %arg4[%c0_4, %c0_5] : memref<1x256xf32, #tpu.memory_space<vmem>>, vector<1x256xf32>
    %7 = vector.broadcast %6 : vector<1x256xf32> to vector<256x256xf32>
    %8 = arith.addf %5, %7 : vector<256x256xf32>
    %cst_6 = arith.constant 0.000000e+00 : f32
    %9 = vector.broadcast %cst_6 : f32 to vector<256x256xf32>
    %10 = arith.maximumf %8, %9 : vector<256x256xf32>
    %11 = tpu.iota {dimensions = array<i32: 0>} : vector<256x256xi32>
    %12 = vector.broadcast %0 : i32 to vector<256x256xi32>
    %13 = arith.addi %11, %12 : vector<256x256xi32>
    %14 = tpu.iota {dimensions = array<i32: 1>} : vector<256x256xi32>
    %c512_i32 = arith.constant 512 : i32
    %15 = vector.broadcast %c512_i32 : i32 to vector<256x256xi32>
    %16 = arith.muli %13, %15 : vector<256x256xi32>
    %c2_i32 = arith.constant 2 : i32
    %17 = vector.broadcast %c2_i32 : i32 to vector<256x256xi32>
    %18 = arith.muli %17, %14 : vector<256x256xi32>
    %19 = arith.addi %16, %18 : vector<256x256xi32>
    %c0_i32 = arith.constant 0 : i32
    %20 = vector.broadcast %c0_i32 : i32 to vector<256x256xi32>
    %21 = arith.addi %19, %20 : vector<256x256xi32>
    %22 = vector.broadcast %2 : i32 to vector<256x256xi32>
    %23 = arith.addi %21, %22 : vector<256x256xi32>
    %c16_i32 = arith.constant 16 : i32
    %24 = vector.broadcast %c16_i32 : i32 to vector<256x256xi32>
    %25 = arith.shrui %23, %24 : vector<256x256xi32>
    %26 = arith.xori %23, %25 : vector<256x256xi32>
    %c2146121005_i32 = arith.constant 2146121005 : i32
    %27 = vector.broadcast %c2146121005_i32 : i32 to vector<256x256xi32>
    %28 = arith.muli %26, %27 : vector<256x256xi32>
    %c15_i32 = arith.constant 15 : i32
    %29 = vector.broadcast %c15_i32 : i32 to vector<256x256xi32>
    %30 = arith.shrui %28, %29 : vector<256x256xi32>
    %31 = arith.xori %28, %30 : vector<256x256xi32>
    %c-2073254261_i32 = arith.constant -2073254261 : i32
    %32 = vector.broadcast %c-2073254261_i32 : i32 to vector<256x256xi32>
    %33 = arith.muli %31, %32 : vector<256x256xi32>
    %c16_i32_7 = arith.constant 16 : i32
    %34 = vector.broadcast %c16_i32_7 : i32 to vector<256x256xi32>
    %35 = arith.shrui %33, %34 : vector<256x256xi32>
    %36 = arith.xori %33, %35 : vector<256x256xi32>
    %c-2147483648_i32 = arith.constant -2147483648 : i32
    %37 = vector.broadcast %c-2147483648_i32 : i32 to vector<256x256xi32>
    %38 = arith.cmpi ult, %36, %37 : vector<256x256xi32>
    %cst_8 = arith.constant 2.000000e+00 : f32
    %39 = vector.broadcast %cst_8 : f32 to vector<256x256xf32>
    %40 = arith.mulf %10, %39 : vector<256x256xf32>
    %cst_9 = arith.constant 0.000000e+00 : f32
    %41 = vector.broadcast %cst_9 : f32 to vector<256x256xf32>
    %42 = arith.select %38, %40, %41 : vector<256x256xi1>, vector<256x256xf32>
    %43 = arith.truncf %42 : vector<256x256xf32> to vector<256x256xbf16>
    %c0_10 = arith.constant 0 : index
    %c0_11 = arith.constant 0 : index
    %44 = vector.load %arg5[%c0_10, %c0_11] : memref<256x256xbf16, #tpu.memory_space<vmem>>, vector<256x256xbf16>
    %cst_12 = arith.constant dense<0.000000e+00> : vector<256x256xf32>
    %45 = tpu.matmul %43, %44, %cst_12 {dimension_numbers = #tpu.dot_dimension_numbers<[1], [0], [0], [1], [0, 0, 1, 1], [], []>} : vector<256x256xbf16>, vector<256x256xbf16>, vector<256x256xf32> -> vector<256x256xf32>
    %c0_13 = arith.constant 0 : index
    %c0_14 = arith.constant 0 : index
    %46 = vector.load %arg6[%c0_13, %c0_14] : memref<1x256xf32, #tpu.memory_space<vmem>>, vector<1x256xf32>
    %47 = vector.broadcast %46 : vector<1x256xf32> to vector<256x256xf32>
    %48 = arith.addf %45, %47 : vector<256x256xf32>
    %cst_15 = arith.constant 0.000000e+00 : f32
    %49 = vector.broadcast %cst_15 : f32 to vector<256x256xf32>
    %50 = arith.maximumf %48, %49 : vector<256x256xf32>
    %51 = tpu.iota {dimensions = array<i32: 0>} : vector<256x256xi32>
    %52 = vector.broadcast %0 : i32 to vector<256x256xi32>
    %53 = arith.addi %51, %52 : vector<256x256xi32>
    %54 = tpu.iota {dimensions = array<i32: 1>} : vector<256x256xi32>
    %c512_i32_16 = arith.constant 512 : i32
    %55 = vector.broadcast %c512_i32_16 : i32 to vector<256x256xi32>
    %56 = arith.muli %53, %55 : vector<256x256xi32>
    %c2_i32_17 = arith.constant 2 : i32
    %57 = vector.broadcast %c2_i32_17 : i32 to vector<256x256xi32>
    %58 = arith.muli %57, %54 : vector<256x256xi32>
    %59 = arith.addi %56, %58 : vector<256x256xi32>
    %c1_i32 = arith.constant 1 : i32
    %60 = vector.broadcast %c1_i32 : i32 to vector<256x256xi32>
    %61 = arith.addi %59, %60 : vector<256x256xi32>
    %62 = vector.broadcast %2 : i32 to vector<256x256xi32>
    %63 = arith.addi %61, %62 : vector<256x256xi32>
    %c16_i32_18 = arith.constant 16 : i32
    %64 = vector.broadcast %c16_i32_18 : i32 to vector<256x256xi32>
    %65 = arith.shrui %63, %64 : vector<256x256xi32>
    %66 = arith.xori %63, %65 : vector<256x256xi32>
    %c2146121005_i32_19 = arith.constant 2146121005 : i32
    %67 = vector.broadcast %c2146121005_i32_19 : i32 to vector<256x256xi32>
    %68 = arith.muli %66, %67 : vector<256x256xi32>
    %c15_i32_20 = arith.constant 15 : i32
    %69 = vector.broadcast %c15_i32_20 : i32 to vector<256x256xi32>
    %70 = arith.shrui %68, %69 : vector<256x256xi32>
    %71 = arith.xori %68, %70 : vector<256x256xi32>
    %c-2073254261_i32_21 = arith.constant -2073254261 : i32
    %72 = vector.broadcast %c-2073254261_i32_21 : i32 to vector<256x256xi32>
    %73 = arith.muli %71, %72 : vector<256x256xi32>
    %c16_i32_22 = arith.constant 16 : i32
    %74 = vector.broadcast %c16_i32_22 : i32 to vector<256x256xi32>
    %75 = arith.shrui %73, %74 : vector<256x256xi32>
    %76 = arith.xori %73, %75 : vector<256x256xi32>
    %c-2147483648_i32_23 = arith.constant -2147483648 : i32
    %77 = vector.broadcast %c-2147483648_i32_23 : i32 to vector<256x256xi32>
    %78 = arith.cmpi ult, %76, %77 : vector<256x256xi32>
    %cst_24 = arith.constant 2.000000e+00 : f32
    %79 = vector.broadcast %cst_24 : f32 to vector<256x256xf32>
    %80 = arith.mulf %50, %79 : vector<256x256xf32>
    %cst_25 = arith.constant 0.000000e+00 : f32
    %81 = vector.broadcast %cst_25 : f32 to vector<256x256xf32>
    %82 = arith.select %78, %80, %81 : vector<256x256xi1>, vector<256x256xf32>
    %83 = arith.truncf %82 : vector<256x256xf32> to vector<256x256xbf16>
    %c0_26 = arith.constant 0 : index
    %c0_27 = arith.constant 0 : index
    %84 = vector.load %arg7[%c0_26, %c0_27] : memref<256x128xbf16, #tpu.memory_space<vmem>>, vector<256x128xbf16>
    %cst_28 = arith.constant dense<0.000000e+00> : vector<256x128xf32>
    %85 = tpu.matmul %83, %84, %cst_28 {dimension_numbers = #tpu.dot_dimension_numbers<[1], [0], [0], [1], [0, 0, 1, 1], [], []>} : vector<256x256xbf16>, vector<256x128xbf16>, vector<256x128xf32> -> vector<256x128xf32>
    %c0_29 = arith.constant 0 : index
    %c0_30 = arith.constant 0 : index
    %86 = vector.load %arg8[%c0_29, %c0_30] : memref<1x128xf32, #tpu.memory_space<vmem>>, vector<1x128xf32>
    %87 = vector.broadcast %86 : vector<1x128xf32> to vector<256x128xf32>
    %88 = arith.addf %85, %87 : vector<256x128xf32>
    %c0_31 = arith.constant 0 : index
    %c0_32 = arith.constant 0 : index
    %89 = vector.load %arg9[%c0_31, %c0_32] : memref<256x128xf32, #tpu.memory_space<vmem>>, vector<256x128xf32>
    tpu.vector_store %arg9[%c0_31, %c0_32], %88 {strides = array<i32>} : memref<256x128xf32, #tpu.memory_space<vmem>>, vector<256x128xf32>,
    return
  }
  func.func @transform_0(%arg0: i32, %arg1: memref<1xi32, #tpu.memory_space<smem>>) -> (i32, i32) {
    %c0_i32 = arith.constant 0 : i32
    %c0_i32_0 = arith.constant 0 : i32
    return %arg0, %c0_i32 : i32, i32
  }
  func.func @transform_1(%arg0: i32, %arg1: memref<1xi32, #tpu.memory_space<smem>>) -> (i32, i32) {
    %c0_i32 = arith.constant 0 : i32
    %c0_i32_0 = arith.constant 0 : i32
    %c0_i32_1 = arith.constant 0 : i32
    return %c0_i32, %c0_i32_0 : i32, i32
  }
  func.func @transform_2(%arg0: i32, %arg1: memref<1xi32, #tpu.memory_space<smem>>) -> (i32, i32) {
    %c0_i32 = arith.constant 0 : i32
    %c0_i32_0 = arith.constant 0 : i32
    %c0_i32_1 = arith.constant 0 : i32
    return %c0_i32, %c0_i32_0 : i32, i32
  }
  func.func @transform_3(%arg0: i32, %arg1: memref<1xi32, #tpu.memory_space<smem>>) -> (i32, i32) {
    %c0_i32 = arith.constant 0 : i32
    %c0_i32_0 = arith.constant 0 : i32
    %c0_i32_1 = arith.constant 0 : i32
    return %c0_i32, %c0_i32_0 : i32, i32
  }
  func.func @transform_4(%arg0: i32, %arg1: memref<1xi32, #tpu.memory_space<smem>>) -> (i32, i32) {
    %c0_i32 = arith.constant 0 : i32
    %c0_i32_0 = arith.constant 0 : i32
    %c0_i32_1 = arith.constant 0 : i32
    return %c0_i32, %c0_i32_0 : i32, i32
  }
  func.func @transform_5(%arg0: i32, %arg1: memref<1xi32, #tpu.memory_space<smem>>) -> (i32, i32) {
    %c0_i32 = arith.constant 0 : i32
    %c0_i32_0 = arith.constant 0 : i32
    %c0_i32_1 = arith.constant 0 : i32
    return %c0_i32, %c0_i32_0 : i32, i32
  }
  func.func @transform_6(%arg0: i32, %arg1: memref<1xi32, #tpu.memory_space<smem>>) -> (i32, i32) {
    %c0_i32 = arith.constant 0 : i32
    %c0_i32_0 = arith.constant 0 : i32
    %c0_i32_1 = arith.constant 0 : i32
    return %c0_i32, %c0_i32_0 : i32, i32
  }
  func.func @transform_7(%arg0: i32, %arg1: memref<1xi32, #tpu.memory_space<smem>>) -> (i32, i32) {
    %c0_i32 = arith.constant 0 : i32
    %c0_i32_0 = arith.constant 0 : i32
    return %arg0, %c0_i32 : i32, i32
  }
}

</mosaic_0001>

<llo_original>
// kernel: tpu_custom_call.1
$region0: #{tpu_custom_call.1}
  #allocation0 [shape = 'u32[]', space=smem, size = 0x4, offset = 0x4, fixed_abs, tag = 'smem constant byte address 0x4 - core index']
  #allocation1 [shape = 'u32[144,128]{1,0:T(1,128)}', space=vmem, size = 0x12000, scoped, tag = 'internal scratch']
  #allocation2 [shape = 's32[1]{0}', space=sflag, size = 0x4, scoped, tag = 'scoped memory for tpu_custom_call.1']
  #allocation3 [shape = 's32[1]{0:T(128)S(6)}', space=smem, size = 0x200, scoped, tag = 'prefetched SMEM operand 0']
  %s0 = inlined_call_operand.<no memory space> [shape: s32[1], index: 0, kind: input, shape index: {}]
  %s1 = inlined_call_operand.vmem [shape: bf16[256,32], index: 1, kind: input, shape index: {}]
  %s2 = inlined_call_operand.vmem [shape: bf16[32,256], index: 2, kind: input, shape index: {}]
  %s3 = inlined_call_operand.vmem [shape: f32[1,256], index: 3, kind: input, shape index: {}]
  %s4 = inlined_call_operand.hbm [shape: bf16[256,256], index: 4, kind: input, shape index: {}]
  %s5 = inlined_call_operand.vmem [shape: f32[1,256], index: 5, kind: input, shape index: {}]
  %s6 = inlined_call_operand.vmem [shape: bf16[256,128], index: 6, kind: input, shape index: {}]
  %s7 = inlined_call_operand.vmem [shape: f32[1,128], index: 7, kind: input, shape index: {}]
  %s8 = inlined_call_operand.hbm [shape: f32[256,128], index: 8, kind: output, shape index: {}]
  %s9 = sld [smem:[#allocation0]]
  $region42: #{tpu_custom_call.1} parent=0
    _
  %s11 = ssub.s32 1, %s9
  %s12 = scalar_select 0, %s11, %s9
  %13 = sst [smem:[#allocation3]] %s0
  $region1: #{tpu_custom_call.1} parent=0
    #allocation4 [shape = 'u8[131072]{0}', space=vmem, size = 0x20000, scoped, tag = 'input window, operand 4, single buffered']
    #allocation5 [shape = 's32[1]{0}', space=sflag, size = 0x4, scoped, tag = 'scoped memory for tpu_custom_call.1']
    #allocation6 [shape = 's32[1]{0}', space=sflag, size = 0x4, scoped, tag = 'scoped memory for tpu_custom_call.1']
    #allocation7 [shape = 'u8[131072]{0}', space=vmem, size = 0x20000, scoped, tag = 'output window, operand 0, single buffered']
    %14 = vsyncpa [#allocation5], 0
    %15 = vsyncpa [#allocation6], 0
    // Predicated region
    $region2: #{tpu_custom_call.1} parent=1 // pred_check
      _
    $region3: #{tpu_custom_call.1} parent=1 // pred_check_branch
      %17 = sbr.rel (0) target = $region5
    $region4: #{tpu_custom_call.1} parent=1 // pred_region
      _
    $region5: #{tpu_custom_call.1} parent=1 // pred_fallthru
      _
    // Predicated region
    $region6: #{tpu_custom_call.1} parent=1 // pred_check
      _
    $region7: #{tpu_custom_call.1} parent=1 // pred_check_branch
      %19 = sbr.rel (0) target = $region9
    $region8: #{tpu_custom_call.1} parent=1 // pred_region
      _
    $region9: #{tpu_custom_call.1} parent=1 // pred_fallthru
      _
    // Predicated region
    $region10: #{tpu_custom_call.1} parent=1 // pred_check
      _
    $region11: #{tpu_custom_call.1} parent=1 // pred_check_branch
      %21 = sbr.rel (0) target = $region13
    $region12: #{tpu_custom_call.1} parent=1 // pred_region
      _
    $region13: #{tpu_custom_call.1} parent=1 // pred_fallthru
      _
    // Predicated region
    $region14: #{tpu_custom_call.1} parent=1 // pred_check
      _
    $region15: #{tpu_custom_call.1} parent=1 // pred_check_branch
      %23 = sbr.rel (0) target = $region17
    $region16: #{tpu_custom_call.1} parent=1 // pred_region
      %s25 = ssub.s32 4096, 4096
      %26 = vsyncadd [#allocation5], %s25
      %s27 = sshll.u32 [#allocation4], 4
      %s28 = int_to_ptr.vmem [resolvable:$true] %s27
      %33 = dma.hbm_to_vmem [thread:$0]  %s4, 4096, %s28, [#allocation5], 128, 128, 8
    $region17: #{tpu_custom_call.1} parent=1 // pred_fallthru
      _
    // Predicated region
    $region18: #{tpu_custom_call.1} parent=1 // pred_check
      _
    $region19: #{tpu_custom_call.1} parent=1 // pred_check_branch
      %35 = sbr.rel (0) target = $region21
    $region20: #{tpu_custom_call.1} parent=1 // pred_region
      _
    $region21: #{tpu_custom_call.1} parent=1 // pred_fallthru
      _
    // Predicated region
    $region22: #{tpu_custom_call.1} parent=1 // pred_check
      _
    $region23: #{tpu_custom_call.1} parent=1 // pred_check_branch
      %37 = sbr.rel (0) target = $region25
    $region24: #{tpu_custom_call.1} parent=1 // pred_region
      _
    $region25: #{tpu_custom_call.1} parent=1 // pred_fallthru
      _
    // Predicated region
    $region26: #{tpu_custom_call.1} parent=1 // pred_check
      _
    $region27: #{tpu_custom_call.1} parent=1 // pred_check_branch
      %39 = sbr.rel (0) target = $region29
    $region28: #{tpu_custom_call.1} parent=1 // pred_region
      _
    $region29: #{tpu_custom_call.1} parent=1 // pred_fallthru
      _
    // Predicated region
    $region30: #{tpu_custom_call.1} parent=1 // pred_check
      _
    $region31: #{tpu_custom_call.1} parent=1 // pred_check_branch
      %41 = sbr.rel (0) target = $region33
    $region32: #{tpu_custom_call.1} parent=1 // pred_region
      %42 = dma.done [#allocation5], 4096
    $region33: #{tpu_custom_call.1} parent=1 // pred_fallthru
      _
    %s44 = smul.u32 0, 256
    %s45 = sld [smem:[#allocation3]]
    %s46 = smul.u32 %s45, 2654435769
    %v47 = vld [vmem:[%s1] sm:$0xf]
    %v48 = vld [vmem:[%s1 + $0x4] sm:$0xf]
    %v49 = vld [vmem:[%s1 + $0x8] sm:$0xf]
    %v50 = vld [vmem:[%s1 + $0xc] sm:$0xf]
    %v51 = vld [vmem:[%s1 + $0x10] sm:$0xf]
    %v52 = vld [vmem:[%s1 + $0x14] sm:$0xf]
    %v53 = vld [vmem:[%s1 + $0x18] sm:$0xf]
    %v54 = vld [vmem:[%s1 + $0x1c] sm:$0xf]
    %v55 = vld [vmem:[%s1 + $0x20] sm:$0xf]
    %v56 = vld [vmem:[%s1 + $0x24] sm:$0xf]
    %v57 = vld [vmem:[%s1 + $0x28] sm:$0xf]
    %v58 = vld [vmem:[%s1 + $0x2c] sm:$0xf]
    %v59 = vld [vmem:[%s1 + $0x30] sm:$0xf]
    %v60 = vld [vmem:[%s1 + $0x34] sm:$0xf]
    %v61 = vld [vmem:[%s1 + $0x38] sm:$0xf]
    %v62 = vld [vmem:[%s1 + $0x3c] sm:$0xf]
    %v63 = vld [vmem:[%s1 + $0x40] sm:$0xf]
    %v64 = vld [vmem:[%s1 + $0x44] sm:$0xf]
    %v65 = vld [vmem:[%s1 + $0x48] sm:$0xf]
    %v66 = vld [vmem:[%s1 + $0x4c] sm:$0xf]
    %v67 = vld [vmem:[%s1 + $0x50] sm:$0xf]
    %v68 = vld [vmem:[%s1 + $0x54] sm:$0xf]
    %v69 = vld [vmem:[%s1 + $0x58] sm:$0xf]
    %v70 = vld [vmem:[%s1 + $0x5c] sm:$0xf]
    %v71 = vld [vmem:[%s1 + $0x60] sm:$0xf]
    %v72 = vld [vmem:[%s1 + $0x64] sm:$0xf]
    %v73 = vld [vmem:[%s1 + $0x68] sm:$0xf]
    %v74 = vld [vmem:[%s1 + $0x6c] sm:$0xf]
    %v75 = vld [vmem:[%s1 + $0x70] sm:$0xf]
    %v76 = vld [vmem:[%s1 + $0x74] sm:$0xf]
    %v77 = vld [vmem:[%s1 + $0x78] sm:$0xf]
    %v78 = vld [vmem:[%s1 + $0x7c] sm:$0xf]
    %v79 = vld [vmem:[%s2] sm:$0xff]
    %v80 = vld [vmem:[%s2 + $0x8] sm:$0xff]
    %v81 = vld [vmem:[%s2 + $0x10] sm:$0xff]
    %v82 = vld [vmem:[%s2 + $0x18] sm:$0xff]
    %v83 = vld [vmem:[%s3] sm:$0x3]
    %v85 = vlaneseq
    %v86 = vshrl.u32 %v85, 7
    %v87 = vsub.s32 0, %v86
    %v88 = vrot.slane %v83, %v87
    %v89 = vlaneseq
    %v90 = vshrl.u32 %v89, 7
    %v91 = vsub.s32 1, %v90
    %v92 = vrot.slane %v83, %v91
    %v127 = vunpack.c.l.b16 %v47
    %v128 = vunpack.c.l.b16 %v48
    %v129 = vunpack.c.l.b16 %v49
    %v130 = vunpack.c.l.b16 %v50
    %v131 = vunpack.c.l.b16 %v51
    %v132 = vunpack.c.l.b16 %v52
    %v133 = vunpack.c.l.b16 %v53
    %v134 = vunpack.c.l.b16 %v54
    %v135 = vunpack.c.l.b16 %v55
    %v136 = vunpack.c.l.b16 %v56
    %v137 = vunpack.c.l.b16 %v57
    %v138 = vunpack.c.l.b16 %v58
    %v139 = vunpack.c.l.b16 %v59
    %v140 = vunpack.c.l.b16 %v60
    %v141 = vunpack.c.l.b16 %v61
    %v142 = vunpack.c.l.b16 %v62
    %v143 = vunpack.c.l.b16 %v63
    %v144 = vunpack.c.l.b16 %v64
    %v145 = vunpack.c.l.b16 %v65
    %v146 = vunpack.c.l.b16 %v66
    %v147 = vunpack.c.l.b16 %v67
    %v148 = vunpack.c.l.b16 %v68
    %v149 = vunpack.c.l.b16 %v69
    %v150 = vunpack.c.l.b16 %v70
    %v151 = vunpack.c.l.b16 %v71
    %v152 = vunpack.c.l.b16 %v72
    %v153 = vunpack.c.l.b16 %v73
    %v154 = vunpack.c.l.b16 %v74
    %v155 = vunpack.c.l.b16 %v75
    %v156 = vunpack.c.l.b16 %v76
    %v157 = vunpack.c.l.b16 %v77
    %v158 = vunpack.c.l.b16 %v78
    %v159 = vpack.c.b16 %v128, %v127
    %v160 = vpack.c.b16 %v130, %v129
    %v161 = vpack.c.b16 %v132, %v131
    %v162 = vpack.c.b16 %v134, %v133
    %v163 = vpack.c.b16 %v136, %v135
    %v164 = vpack.c.b16 %v138, %v137
    %v165 = vpack.c.b16 %v140, %v139
    %v166 = vpack.c.b16 %v142, %v141
    %v167 = vpack.c.b16 %v144, %v143
    %v168 = vpack.c.b16 %v146, %v145
    %v169 = vpack.c.b16 %v148, %v147
    %v170 = vpack.c.b16 %v150, %v149
    %v171 = vpack.c.b16 %v152, %v151
    %v172 = vpack.c.b16 %v154, %v153
    %v173 = vpack.c.b16 %v156, %v155
    %v174 = vpack.c.b16 %v158, %v157
    %v179 = vunpack.c.l.b16 %v79
    %v180 = vunpack.c.h.b16 %v79
    %v181 = vunpack.c.l.b16 %v80
    %v182 = vunpack.c.h.b16 %v80
    %v183 = vunpack.c.l.b16 %v81
    %v184 = vunpack.c.h.b16 %v81
    %v185 = vunpack.c.l.b16 %v82
    %v186 = vunpack.c.h.b16 %v82
    %v187 = vpack.c.b16 %v181, %v179
    %v188 = vpack.c.b16 %v182, %v180
    %v189 = vpack.c.b16 %v185, %v183
    %v190 = vpack.c.b16 %v186, %v184
    %vm195 = vcmask 261120
    %v197 = vsel %vm195, %v159, 0
    %v200 = vsel %vm195, %v160, 0
    %v203 = vsel %vm195, %v161, 0
    %v206 = vsel %vm195, %v162, 0
    %v209 = vsel %vm195, %v163, 0
    %v212 = vsel %vm195, %v164, 0
    %v215 = vsel %vm195, %v165, 0
    %v218 = vsel %vm195, %v166, 0
    %v221 = vsel %vm195, %v167, 0
    %v224 = vsel %vm195, %v168, 0
    %v227 = vsel %vm195, %v169, 0
    %v230 = vsel %vm195, %v170, 0
    %v233 = vsel %vm195, %v171, 0
    %v236 = vsel %vm195, %v172, 0
    %v239 = vsel %vm195, %v173, 0
    %v242 = vsel %vm195, %v174, 0
    %244 = vmatprep.subr.bf16.mxu0 0
    %245 = vmatpush1.bf16.msra.mxu0 0
    %246 = vmatprep.subr.bf16.mxu0 0
    %247 = vmatpush1.bf16.msra.mxu0 0
    %248 = vmatprep.subr.bf16.mxu0 0
    %249 = vmatpush1.bf16.msra.mxu0 0
    %250 = vmatprep.subr.bf16.mxu0 0
    %251 = vmatpush1.bf16.msra.mxu0 0
    %252 = vmatprep.subr.bf16.mxu0 0
    %253 = vmatpush1.bf16.msra.mxu0 0
    %254 = vmatprep.subr.bf16.mxu0 0
    %255 = vmatpush1.bf16.msra.mxu0 0
    %256 = vmatprep.subr.bf16.mxu0 %v190
    %257 = vmatpush1.bf16.msra.mxu0 %v189
    %258 = vmatprep.subr.bf16.mxu0 %v188
    %259 = vmatpush1.bf16.msra.mxu0 %v187
    %260 = vmatprep.subr.bf16.mxu0 0
    %261 = vmatpush2.bf16.msra.mxu0 0
    %262 = vmatprep.subr.bf16.mxu0 0
    %263 = vmatpush2.bf16.msra.mxu0 0
    %264 = vmatprep.subr.bf16.mxu0 0
    %265 = vmatpush2.bf16.msra.mxu0 0
    %266 = vmatprep.subr.bf16.mxu0 0
    %267 = vmatpush2.bf16.msra.mxu0 0
    %268 = vmatprep.subr.bf16.mxu0 0
    %269 = vmatpush2.bf16.msra.mxu0 0
    %270 = vmatprep.subr.bf16.mxu0 0
    %271 = vmatpush2.bf16.msra.mxu0 0
    %272 = vmatprep.subr.bf16.mxu0 0
    %273 = vmatpush2.bf16.msra.mxu0 0
    %274 = vmatprep.subr.bf16.mxu0 0
    %275 = vmatpush2.bf16.msra.mxu0 0
    %276 = vmatprep.mubr.bf16.mxu0 0
    %277 = vmatmul.mubr.bf16.gmra.mxu0 %v197
    %v278 = vpop.f32.mrf.mxu0
    %v279 = vadd.f32 %v88, %v278
    %v280 = vpop.f32.mrf.mxu0
    %v281 = vadd.f32 %v92, %v280
    %v282 = vpop.f32.mrf.mxu0
    %v283 = vadd.f32 %v88, %v282
    %v284 = vpop.f32.mrf.mxu0
    %v285 = vadd.f32 %v92, %v284
    %286 = vmatprep.mubr.bf16.mxu0 0
    %287 = vmatmul.mubr.bf16.gmra.mxu0 %v200
    %v288 = vpop.f32.mrf.mxu0
    %v289 = vadd.f32 %v88, %v288
    %v290 = vpop.f32.mrf.mxu0
    %v291 = vadd.f32 %v92, %v290
    %v292 = vpop.f32.mrf.mxu0
    %v293 = vadd.f32 %v88, %v292
    %v294 = vpop.f32.mrf.mxu0
    %v295 = vadd.f32 %v92, %v294
    %296 = vmatprep.mubr.bf16.mxu0 0
    %297 = vmatmul.mubr.bf16.gmra.mxu0 %v203
    %v298 = vpop.f32.mrf.mxu0
    %v299 = vadd.f32 %v88, %v298
    %v300 = vpop.f32.mrf.mxu0
    %v301 = vadd.f32 %v92, %v300
    %v302 = vpop.f32.mrf.mxu0
    %v303 = vadd.f32 %v88, %v302
    %v304 = vpop.f32.mrf.mxu0
    %v305 = vadd.f32 %v92, %v304
    %306 = vmatprep.mubr.bf16.mxu0 0
    %307 = vmatmul.mubr.bf16.gmra.mxu0 %v206
    %v308 = vpop.f32.mrf.mxu0
    %v309 = vadd.f32 %v88, %v308
    %v310 = vpop.f32.mrf.mxu0
    %v311 = vadd.f32 %v92, %v310
    %v312 = vpop.f32.mrf.mxu0
    %v313 = vadd.f32 %v88, %v312
    %v314 = vpop.f32.mrf.mxu0
    %v315 = vadd.f32 %v92, %v314
    %316 = vmatprep.mubr.bf16.mxu0 0
    %317 = vmatmul.mubr.bf16.gmra.mxu0 %v209
    %v318 = vpop.f32.mrf.mxu0
    %v319 = vadd.f32 %v88, %v318
    %v320 = vpop.f32.mrf.mxu0
    %v321 = vadd.f32 %v92, %v320
    %v322 = vpop.f32.mrf.mxu0
    %v323 = vadd.f32 %v88, %v322
    %v324 = vpop.f32.mrf.mxu0
    %v325 = vadd.f32 %v92, %v324
    %326 = vmatprep.mubr.bf16.mxu0 0
    %327 = vmatmul.mubr.bf16.gmra.mxu0 %v212
    %v328 = vpop.f32.mrf.mxu0
    %v329 = vadd.f32 %v88, %v328
    %v330 = vpop.f32.mrf.mxu0
    %v331 = vadd.f32 %v92, %v330
    %v332 = vpop.f32.mrf.mxu0
    %v333 = vadd.f32 %v88, %v332
    %v334 = vpop.f32.mrf.mxu0
    %v335 = vadd.f32 %v92, %v334
    %336 = vmatprep.mubr.bf16.mxu0 0
    %337 = vmatmul.mubr.bf16.gmra.mxu0 %v215
    %v338 = vpop.f32.mrf.mxu0
    %v339 = vadd.f32 %v88, %v338
    %v340 = vpop.f32.mrf.mxu0
    %v341 = vadd.f32 %v92, %v340
    %v342 = vpop.f32.mrf.mxu0
    %v343 = vadd.f32 %v88, %v342
    %v344 = vpop.f32.mrf.mxu0
    %v345 = vadd.f32 %v92, %v344
    %346 = vmatprep.mubr.bf16.mxu0 0
    %347 = vmatmul.mubr.bf16.gmra.mxu0 %v218
    %v348 = vpop.f32.mrf.mxu0
    %v349 = vadd.f32 %v88, %v348
    %v350 = vpop.f32.mrf.mxu0
    %v351 = vadd.f32 %v92, %v350
    %v352 = vpop.f32.mrf.mxu0
    %v353 = vadd.f32 %v88, %v352
    %v354 = vpop.f32.mrf.mxu0
    %v355 = vadd.f32 %v92, %v354
    %356 = vmatprep.mubr.bf16.mxu0 0
    %357 = vmatmul.mubr.bf16.gmra.mxu0 %v221
    %v358 = vpop.f32.mrf.mxu0
    %v359 = vadd.f32 %v88, %v358
    %v360 = vpop.f32.mrf.mxu0
    %v361 = vadd.f32 %v92, %v360
    %v362 = vpop.f32.mrf.mxu0
    %v363 = vadd.f32 %v88, %v362
    %v364 = vpop.f32.mrf.mxu0
    %v365 = vadd.f32 %v92, %v364
    %366 = vmatprep.mubr.bf16.mxu0 0
    %367 = vmatmul.mubr.bf16.gmra.mxu0 %v224
    %v368 = vpop.f32.mrf.mxu0
    %v369 = vadd.f32 %v88, %v368
    %v370 = vpop.f32.mrf.mxu0
    %v371 = vadd.f32 %v92, %v370
    %v372 = vpop.f32.mrf.mxu0
    %v373 = vadd.f32 %v88, %v372
    %v374 = vpop.f32.mrf.mxu0
    %v375 = vadd.f32 %v92, %v374
    %376 = vmatprep.mubr.bf16.mxu0 0
    %377 = vmatmul.mubr.bf16.gmra.mxu0 %v227
    %v378 = vpop.f32.mrf.mxu0
    %v379 = vadd.f32 %v88, %v378
    %v380 = vpop.f32.mrf.mxu0
    %v381 = vadd.f32 %v92, %v380
    %v382 = vpop.f32.mrf.mxu0
    %v383 = vadd.f32 %v88, %v382
    %v384 = vpop.f32.mrf.mxu0
    %v385 = vadd.f32 %v92, %v384
    %386 = vmatprep.mubr.bf16.mxu0 0
    %387 = vmatmul.mubr.bf16.gmra.mxu0 %v230
    %v388 = vpop.f32.mrf.mxu0
    %v389 = vadd.f32 %v88, %v388
    %v390 = vpop.f32.mrf.mxu0
    %v391 = vadd.f32 %v92, %v390
    %v392 = vpop.f32.mrf.mxu0
    %v393 = vadd.f32 %v88, %v392
    %v394 = vpop.f32.mrf.mxu0
    %v395 = vadd.f32 %v92, %v394
    %396 = vmatprep.mubr.bf16.mxu0 0
    %397 = vmatmul.mubr.bf16.gmra.mxu0 %v233
    %v398 = vpop.f32.mrf.mxu0
    %v399 = vadd.f32 %v88, %v398
    %v400 = vpop.f32.mrf.mxu0
    %v401 = vadd.f32 %v92, %v400
    %v402 = vpop.f32.mrf.mxu0
    %v403 = vadd.f32 %v88, %v402
    %v404 = vpop.f32.mrf.mxu0
    %v405 = vadd.f32 %v92, %v404
    %406 = vmatprep.mubr.bf16.mxu0 0
    %407 = vmatmul.mubr.bf16.gmra.mxu0 %v236
    %v408 = vpop.f32.mrf.mxu0
    %v409 = vadd.f32 %v88, %v408
    %v410 = vpop.f32.mrf.mxu0
    %v411 = vadd.f32 %v92, %v410
    %v412 = vpop.f32.mrf.mxu0
    %v413 = vadd.f32 %v88, %v412
    %v414 = vpop.f32.mrf.mxu0
    %v415 = vadd.f32 %v92, %v414
    %416 = vmatprep.mubr.bf16.mxu0 0
    %417 = vmatmul.mubr.bf16.gmra.mxu0 %v239
    %v418 = vpop.f32.mrf.mxu0
    %v419 = vadd.f32 %v88, %v418
    %v420 = vpop.f32.mrf.mxu0
    %v421 = vadd.f32 %v92, %v420
    %v422 = vpop.f32.mrf.mxu0
    %v423 = vadd.f32 %v88, %v422
    %v424 = vpop.f32.mrf.mxu0
    %v425 = vadd.f32 %v92, %v424
    %426 = vmatprep.mubr.bf16.mxu0 0
    %427 = vmatmul.mubr.bf16.gmra.mxu0 %v242
    %v428 = vpop.f32.mrf.mxu0
    %v429 = vadd.f32 %v88, %v428
    %v430 = vpop.f32.mrf.mxu0
    %v431 = vadd.f32 %v92, %v430
    %v432 = vpop.f32.mrf.mxu0
    %v433 = vadd.f32 %v88, %v432
    %v434 = vpop.f32.mrf.mxu0
    %v435 = vadd.f32 %v92, %v434
    %436 = vdwg.mxu0
    %v437 = vmax.f32 %v279, 0.0
    %v438 = vmax.f32 %v281, 0.0
    %v439 = vmax.f32 %v283, 0.0
    %v440 = vmax.f32 %v285, 0.0
    %v441 = vmax.f32 %v289, 0.0
    %v442 = vmax.f32 %v291, 0.0
    %v443 = vmax.f32 %v293, 0.0
    %v444 = vmax.f32 %v295, 0.0
    %v445 = vmax.f32 %v299, 0.0
    %v446 = vmax.f32 %v301, 0.0
    %v447 = vmax.f32 %v303, 0.0
    %v448 = vmax.f32 %v305, 0.0
    %v449 = vmax.f32 %v309, 0.0
    %v450 = vmax.f32 %v311, 0.0
    %v451 = vmax.f32 %v313, 0.0
    %v452 = vmax.f32 %v315, 0.0
    %v453 = vmax.f32 %v319, 0.0
    %v454 = vmax.f32 %v321, 0.0
    %v455 = vmax.f32 %v323, 0.0
    %v456 = vmax.f32 %v325, 0.0
    %v457 = vmax.f32 %v329, 0.0
    %v458 = vmax.f32 %v331, 0.0
    %v459 = vmax.f32 %v333, 0.0
    %v460 = vmax.f32 %v335, 0.0
    %v461 = vmax.f32 %v339, 0.0
    %v462 = vmax.f32 %v341, 0.0
    %v463 = vmax.f32 %v343, 0.0
    %v464 = vmax.f32 %v345, 0.0
    %v465 = vmax.f32 %v349, 0.0
    %v466 = vmax.f32 %v351, 0.0
    %v467 = vmax.f32 %v353, 0.0
    %v468 = vmax.f32 %v355, 0.0
    %v469 = vmax.f32 %v359, 0.0
    %v470 = vmax.f32 %v361, 0.0
    %v471 = vmax.f32 %v363, 0.0
    %v472 = vmax.f32 %v365, 0.0
    %v473 = vmax.f32 %v369, 0.0
    %v474 = vmax.f32 %v371, 0.0
    %v475 = vmax.f32 %v373, 0.0
    %v476 = vmax.f32 %v375, 0.0
    %v477 = vmax.f32 %v379, 0.0
    %v478 = vmax.f32 %v381, 0.0
    %v479 = vmax.f32 %v383, 0.0
    %v480 = vmax.f32 %v385, 0.0
    %v481 = vmax.f32 %v389, 0.0
    %v482 = vmax.f32 %v391, 0.0
    %v483 = vmax.f32 %v393, 0.0
    %v484 = vmax.f32 %v395, 0.0
    %v485 = vmax.f32 %v399, 0.0
    %v486 = vmax.f32 %v401, 0.0
    %v487 = vmax.f32 %v403, 0.0
    %v488 = vmax.f32 %v405, 0.0
    %v489 = vmax.f32 %v409, 0.0
    %v490 = vmax.f32 %v411, 0.0
    %v491 = vmax.f32 %v413, 0.0
    %v492 = vmax.f32 %v415, 0.0
    %v493 = vmax.f32 %v419, 0.0
    %v494 = vmax.f32 %v421, 0.0
    %v495 = vmax.f32 %v423, 0.0
    %v496 = vmax.f32 %v425, 0.0
    %v497 = vmax.f32 %v429, 0.0
    %v498 = vmax.f32 %v431, 0.0
    %v499 = vmax.f32 %v433, 0.0
    %v500 = vmax.f32 %v435, 0.0
    %v501 = vlaneseq
    %v502 = vshrl.u32 %v501, 7
    %v503 = vadd.s32 %v502, 8
    %v504 = vadd.s32 %v502, 16
    %v505 = vadd.s32 %v502, 24
    %v506 = vadd.s32 %v502, 32
    %v507 = vadd.s32 %v502, 40
    %v508 = vadd.s32 %v502, 48
    %v509 = vadd.s32 %v502, 56
    %v510 = vadd.s32 %v502, 64
    %v511 = vadd.s32 %v502, 72
    %v512 = vadd.s32 %v502, 80
    %v513 = vadd.s32 %v502, 88
    %v514 = vadd.s32 %v502, 96
    %v515 = vadd.s32 %v502, 104
    %v516 = vadd.s32 %v502, 112
    %v517 = vadd.s32 %v502, 120
    %v518 = vadd.s32 %v502, 128
    %v519 = vadd.s32 %v502, 136
    %v520 = vadd.s32 %v502, 144
    %v521 = vadd.s32 %v502, 152
    %v522 = vadd.s32 %v502, 160
    %v523 = vadd.s32 %v502, 168
    %v524 = vadd.s32 %v502, 176
    %v525 = vadd.s32 %v502, 184
    %v526 = vadd.s32 %v502, 192
    %v527 = vadd.s32 %v502, 200
    %v528 = vadd.s32 %v502, 208
    %v529 = vadd.s32 %v502, 216
    %v530 = vadd.s32 %v502, 224
    %v531 = vadd.s32 %v502, 232
    %v532 = vadd.s32 %v502, 240
    %v533 = vadd.s32 %v502, 248
    %v534 = vstv %s44
    %v535 = vadd.s32 %v502, %v534
    %v536 = vadd.s32 %v503, %v534
    %v537 = vadd.s32 %v504, %v534
    %v538 = vadd.s32 %v505, %v534
    %v539 = vadd.s32 %v506, %v534
    %v540 = vadd.s32 %v507, %v534
    %v541 = vadd.s32 %v508, %v534
    %v542 = vadd.s32 %v509, %v534
    %v543 = vadd.s32 %v510, %v534
    %v544 = vadd.s32 %v511, %v534
    %v545 = vadd.s32 %v512, %v534
    %v546 = vadd.s32 %v513, %v534
    %v547 = vadd.s32 %v514, %v534
    %v548 = vadd.s32 %v515, %v534
    %v549 = vadd.s32 %v516, %v534
    %v550 = vadd.s32 %v517, %v534
    %v551 = vadd.s32 %v518, %v534
    %v552 = vadd.s32 %v519, %v534
    %v553 = vadd.s32 %v520, %v534
    %v554 = vadd.s32 %v521, %v534
    %v555 = vadd.s32 %v522, %v534
    %v556 = vadd.s32 %v523, %v534
    %v557 = vadd.s32 %v524, %v534
    %v558 = vadd.s32 %v525, %v534
    %v559 = vadd.s32 %v526, %v534
    %v560 = vadd.s32 %v527, %v534
    %v561 = vadd.s32 %v528, %v534
    %v562 = vadd.s32 %v529, %v534
    %v563 = vadd.s32 %v530, %v534
    %v564 = vadd.s32 %v531, %v534
    %v565 = vadd.s32 %v532, %v534
    %v566 = vadd.s32 %v533, %v534
    %v567 = vlaneseq
    %v568 = vand.u32 %v567, 127
    %v569 = vadd.s32 %v568, 128
    %v570 = vmul.u32 %v535, 512
    %v571 = vmul.u32 %v536, 512
    %v572 = vmul.u32 %v537, 512
    %v573 = vmul.u32 %v538, 512
    %v574 = vmul.u32 %v539, 512
    %v575 = vmul.u32 %v540, 512
    %v576 = vmul.u32 %v541, 512
    %v577 = vmul.u32 %v542, 512
    %v578 = vmul.u32 %v543, 512
    %v579 = vmul.u32 %v544, 512
    %v580 = vmul.u32 %v545, 512
    %v581 = vmul.u32 %v546, 512
    %v582 = vmul.u32 %v547, 512
    %v583 = vmul.u32 %v548, 512
    %v584 = vmul.u32 %v549, 512
    %v585 = vmul.u32 %v550, 512
    %v586 = vmul.u32 %v551, 512
    %v587 = vmul.u32 %v552, 512
    %v588 = vmul.u32 %v553, 512
    %v589 = vmul.u32 %v554, 512
    %v590 = vmul.u32 %v555, 512
    %v591 = vmul.u32 %v556, 512
    %v592 = vmul.u32 %v557, 512
    %v593 = vmul.u32 %v558, 512
    %v594 = vmul.u32 %v559, 512
    %v595 = vmul.u32 %v560, 512
    %v596 = vmul.u32 %v561, 512
    %v597 = vmul.u32 %v562, 512
    %v598 = vmul.u32 %v563, 512
    %v599 = vmul.u32 %v564, 512
    %v600 = vmul.u32 %v565, 512
    %v601 = vmul.u32 %v566, 512
    %v602 = vmul.u32 %v568, 2
    %v603 = vmul.u32 %v569, 2
    %v604 = vadd.s32 %v570, %v602
    %v605 = vadd.s32 %v570, %v603
    %v606 = vadd.s32 %v571, %v602
    %v607 = vadd.s32 %v571, %v603
    %v608 = vadd.s32 %v572, %v602
    %v609 = vadd.s32 %v572, %v603
    %v610 = vadd.s32 %v573, %v602
    %v611 = vadd.s32 %v573, %v603
    %v612 = vadd.s32 %v574, %v602
    %v613 = vadd.s32 %v574, %v603
    %v614 = vadd.s32 %v575, %v602
    %v615 = vadd.s32 %v575, %v603
    %v616 = vadd.s32 %v576, %v602
    %v617 = vadd.s32 %v576, %v603
    %v618 = vadd.s32 %v577, %v602
    %v619 = vadd.s32 %v577, %v603
    %v620 = vadd.s32 %v578, %v602
    %v621 = vadd.s32 %v578, %v603
    %v622 = vadd.s32 %v579, %v602
    %v623 = vadd.s32 %v579, %v603
    %v624 = vadd.s32 %v580, %v602
    %v625 = vadd.s32 %v580, %v603
    %v626 = vadd.s32 %v581, %v602
    %v627 = vadd.s32 %v581, %v603
    %v628 = vadd.s32 %v582, %v602
    %v629 = vadd.s32 %v582, %v603
    %v630 = vadd.s32 %v583, %v602
    %v631 = vadd.s32 %v583, %v603
    %v632 = vadd.s32 %v584, %v602
    %v633 = vadd.s32 %v584, %v603
    %v634 = vadd.s32 %v585, %v602
    %v635 = vadd.s32 %v585, %v603
    %v636 = vadd.s32 %v586, %v602
    %v637 = vadd.s32 %v586, %v603
    %v638 = vadd.s32 %v587, %v602
    %v639 = vadd.s32 %v587, %v603
    %v640 = vadd.s32 %v588, %v602
    %v641 = vadd.s32 %v588, %v603
    %v642 = vadd.s32 %v589, %v602
    %v643 = vadd.s32 %v589, %v603
    %v644 = vadd.s32 %v590, %v602
    %v645 = vadd.s32 %v590, %v603
    %v646 = vadd.s32 %v591, %v602
    %v647 = vadd.s32 %v591, %v603
    %v648 = vadd.s32 %v592, %v602
    %v649 = vadd.s32 %v592, %v603
    %v650 = vadd.s32 %v593, %v602
    %v651 = vadd.s32 %v593, %v603
    %v652 = vadd.s32 %v594, %v602
    %v653 = vadd.s32 %v594, %v603
    %v654 = vadd.s32 %v595, %v602
    %v655 = vadd.s32 %v595, %v603
    %v656 = vadd.s32 %v596, %v602
    %v657 = vadd.s32 %v596, %v603
    %v658 = vadd.s32 %v597, %v602
    %v659 = vadd.s32 %v597, %v603
    %v660 = vadd.s32 %v598, %v602
    %v661 = vadd.s32 %v598, %v603
    %v662 = vadd.s32 %v599, %v602
    %v663 = vadd.s32 %v599, %v603
    %v664 = vadd.s32 %v600, %v602
    %v665 = vadd.s32 %v600, %v603
    %v666 = vadd.s32 %v601, %v602
    %v667 = vadd.s32 %v601, %v603
    %v668 = vstv %s46
    %v669 = vadd.s32 %v604, %v668
    %v670 = vadd.s32 %v605, %v668
    %v671 = vadd.s32 %v606, %v668
    %v672 = vadd.s32 %v607, %v668
    %v673 = vadd.s32 %v608, %v668
    %v674 = vadd.s32 %v609, %v668
    %v675 = vadd.s32 %v610, %v668
    %v676 = vadd.s32 %v611, %v668
    %v677 = vadd.s32 %v612, %v668
    %v678 = vadd.s32 %v613, %v668
    %v679 = vadd.s32 %v614, %v668
    %v680 = vadd.s32 %v615, %v668
    %v681 = vadd.s32 %v616, %v668
    %v682 = vadd.s32 %v617, %v668
    %v683 = vadd.s32 %v618, %v668
    %v684 = vadd.s32 %v619, %v668
    %v685 = vadd.s32 %v620, %v668
    %v686 = vadd.s32 %v621, %v668
    %v687 = vadd.s32 %v622, %v668
    %v688 = vadd.s32 %v623, %v668
    %v689 = vadd.s32 %v624, %v668
    %v690 = vadd.s32 %v625, %v668
    %v691 = vadd.s32 %v626, %v668
    %v692 = vadd.s32 %v627, %v668
    %v693 = vadd.s32 %v628, %v668
    %v694 = vadd.s32 %v629, %v668
    %v695 = vadd.s32 %v630, %v668
    %v696 = vadd.s32 %v631, %v668
    %v697 = vadd.s32 %v632, %v668
    %v698 = vadd.s32 %v633, %v668
    %v699 = vadd.s32 %v634, %v668
    %v700 = vadd.s32 %v635, %v668
    %v701 = vadd.s32 %v636, %v668
    %v702 = vadd.s32 %v637, %v668
    %v703 = vadd.s32 %v638, %v668
    %v704 = vadd.s32 %v639, %v668
    %v705 = vadd.s32 %v640, %v668
    %v706 = vadd.s32 %v641, %v668
    %v707 = vadd.s32 %v642, %v668
    %v708 = vadd.s32 %v643, %v668
    %v709 = vadd.s32 %v644, %v668
    %v710 = vadd.s32 %v645, %v668
    %v711 = vadd.s32 %v646, %v668
    %v712 = vadd.s32 %v647, %v668
    %v713 = vadd.s32 %v648, %v668
    %v714 = vadd.s32 %v649, %v668
    %v715 = vadd.s32 %v650, %v668
    %v716 = vadd.s32 %v651, %v668
    %v717 = vadd.s32 %v652, %v668
    %v718 = vadd.s32 %v653, %v668
    %v719 = vadd.s32 %v654, %v668
    %v720 = vadd.s32 %v655, %v668
    %v721 = vadd.s32 %v656, %v668
    %v722 = vadd.s32 %v657, %v668
    %v723 = vadd.s32 %v658, %v668
    %v724 = vadd.s32 %v659, %v668
    %v725 = vadd.s32 %v660, %v668
    %v726 = vadd.s32 %v661, %v668
    %v727 = vadd.s32 %v662, %v668
    %v728 = vadd.s32 %v663, %v668
    %v729 = vadd.s32 %v664, %v668
    %v730 = vadd.s32 %v665, %v668
    %v731 = vadd.s32 %v666, %v668
    %v732 = vadd.s32 %v667, %v668
    %v733 = vshrl.u32 %v669, 16
    %v734 = vshrl.u32 %v670, 16
    %v735 = vshrl.u32 %v671, 16
    %v736 = vshrl.u32 %v672, 16
    %v737 = vshrl.u32 %v673, 16
    %v738 = vshrl.u32 %v674, 16
    %v739 = vshrl.u32 %v675, 16
    %v740 = vshrl.u32 %v676, 16
    %v741 = vshrl.u32 %v677, 16
    %v742 = vshrl.u32 %v678, 16
    %v743 = vshrl.u32 %v679, 16
    %v744 = vshrl.u32 %v680, 16
    %v745 = vshrl.u32 %v681, 16
    %v746 = vshrl.u32 %v682, 16
    %v747 = vshrl.u32 %v683, 16
    %v748 = vshrl.u32 %v684, 16
    %v749 = vshrl.u32 %v685, 16
    %v750 = vshrl.u32 %v686, 16
    %v751 = vshrl.u32 %v687, 16
    %v752 = vshrl.u32 %v688, 16
    %v753 = vshrl.u32 %v689, 16
    %v754 = vshrl.u32 %v690, 16
    %v755 = vshrl.u32 %v691, 16
    %v756 = vshrl.u32 %v692, 16
    %v757 = vshrl.u32 %v693, 16
    %v758 = vshrl.u32 %v694, 16
    %v759 = vshrl.u32 %v695, 16
    %v760 = vshrl.u32 %v696, 16
    %v761 = vshrl.u32 %v697, 16
    %v762 = vshrl.u32 %v698, 16
    %v763 = vshrl.u32 %v699, 16
    %v764 = vshrl.u32 %v700, 16
    %v765 = vshrl.u32 %v701, 16
    %v766 = vshrl.u32 %v702, 16
    %v767 = vshrl.u32 %v703, 16
    %v768 = vshrl.u32 %v704, 16
    %v769 = vshrl.u32 %v705, 16
    %v770 = vshrl.u32 %v706, 16
    %v771 = vshrl.u32 %v707, 16
    %v772 = vshrl.u32 %v708, 16
    %v773 = vshrl.u32 %v709, 16
    %v774 = vshrl.u32 %v710, 16
    %v775 = vshrl.u32 %v711, 16
    %v776 = vshrl.u32 %v712, 16
    %v777 = vshrl.u32 %v713, 16
    %v778 = vshrl.u32 %v714, 16
    %v779 = vshrl.u32 %v715, 16
    %v780 = vshrl.u32 %v716, 16
    %v781 = vshrl.u32 %v717, 16
    %v782 = vshrl.u32 %v718, 16
    %v783 = vshrl.u32 %v719, 16
    %v784 = vshrl.u32 %v720, 16
    %v785 = vshrl.u32 %v721, 16
    %v786 = vshrl.u32 %v722, 16
    %v787 = vshrl.u32 %v723, 16
    %v788 = vshrl.u32 %v724, 16
    %v789 = vshrl.u32 %v725, 16
    %v790 = vshrl.u32 %v726, 16
    %v791 = vshrl.u32 %v727, 16
    %v792 = vshrl.u32 %v728, 16
    %v793 = vshrl.u32 %v729, 16
    %v794 = vshrl.u32 %v730, 16
    %v795 = vshrl.u32 %v731, 16
    %v796 = vshrl.u32 %v732, 16
    %v797 = vxor.u32 %v669, %v733
    %v798 = vxor.u32 %v670, %v734
    %v799 = vxor.u32 %v671, %v735
    %v800 = vxor.u32 %v672, %v736
    %v801 = vxor.u32 %v673, %v737
    %v802 = vxor.u32 %v674, %v738
    %v803 = vxor.u32 %v675, %v739
    %v804 = vxor.u32 %v676, %v740
    %v805 = vxor.u32 %v677, %v741
    %v806 = vxor.u32 %v678, %v742
    %v807 = vxor.u32 %v679, %v743
    %v808 = vxor.u32 %v680, %v744
    %v809 = vxor.u32 %v681, %v745
    %v810 = vxor.u32 %v682, %v746
    %v811 = vxor.u32 %v683, %v747
    %v812 = vxor.u32 %v684, %v748
    %v813 = vxor.u32 %v685, %v749
    %v814 = vxor.u32 %v686, %v750
    %v815 = vxor.u32 %v687, %v751
    %v816 = vxor.u32 %v688, %v752
    %v817 = vxor.u32 %v689, %v753
    %v818 = vxor.u32 %v690, %v754
    %v819 = vxor.u32 %v691, %v755
    %v820 = vxor.u32 %v692, %v756
    %v821 = vxor.u32 %v693, %v757
    %v822 = vxor.u32 %v694, %v758
    %v823 = vxor.u32 %v695, %v759
    %v824 = vxor.u32 %v696, %v760
    %v825 = vxor.u32 %v697, %v761
    %v826 = vxor.u32 %v698, %v762
    %v827 = vxor.u32 %v699, %v763
    %v828 = vxor.u32 %v700, %v764
    %v829 = vxor.u32 %v701, %v765
    %v830 = vxor.u32 %v702, %v766
    %v831 = vxor.u32 %v703, %v767
    %v832 = vxor.u32 %v704, %v768
    %v833 = vxor.u32 %v705, %v769
    %v834 = vxor.u32 %v706, %v770
    %v835 = vxor.u32 %v707, %v771
    %v836 = vxor.u32 %v708, %v772
    %v837 = vxor.u32 %v709, %v773
    %v838 = vxor.u32 %v710, %v774
    %v839 = vxor.u32 %v711, %v775
    %v840 = vxor.u32 %v712, %v776
    %v841 = vxor.u32 %v713, %v777
    %v842 = vxor.u32 %v714, %v778
    %v843 = vxor.u32 %v715, %v779
    %v844 = vxor.u32 %v716, %v780
    %v845 = vxor.u32 %v717, %v781
    %v846 = vxor.u32 %v718, %v782
    %v847 = vxor.u32 %v719, %v783
    %v848 = vxor.u32 %v720, %v784
    %v849 = vxor.u32 %v721, %v785
    %v850 = vxor.u32 %v722, %v786
    %v851 = vxor.u32 %v723, %v787
    %v852 = vxor.u32 %v724, %v788
    %v853 = vxor.u32 %v725, %v789
    %v854 = vxor.u32 %v726, %v790
    %v855 = vxor.u32 %v727, %v791
    %v856 = vxor.u32 %v728, %v792
    %v857 = vxor.u32 %v729, %v793
    %v858 = vxor.u32 %v730, %v794
    %v859 = vxor.u32 %v731, %v795
    %v860 = vxor.u32 %v732, %v796
    %v861 = vmul.u32 %v797, 2146121005
    %v862 = vmul.u32 %v798, 2146121005
    %v863 = vmul.u32 %v799, 2146121005
    %v864 = vmul.u32 %v800, 2146121005
    %v865 = vmul.u32 %v801, 2146121005
    %v866 = vmul.u32 %v802, 2146121005
    %v867 = vmul.u32 %v803, 2146121005
    %v868 = vmul.u32 %v804, 2146121005
    %v869 = vmul.u32 %v805, 2146121005
    %v870 = vmul.u32 %v806, 2146121005
    %v871 = vmul.u32 %v807, 2146121005
    %v872 = vmul.u32 %v808, 2146121005
    %v873 = vmul.u32 %v809, 2146121005
    %v874 = vmul.u32 %v810, 2146121005
    %v875 = vmul.u32 %v811, 2146121005
    %v876 = vmul.u32 %v812, 2146121005
    %v877 = vmul.u32 %v813, 2146121005
    %v878 = vmul.u32 %v814, 2146121005
    %v879 = vmul.u32 %v815, 2146121005
    %v880 = vmul.u32 %v816, 2146121005
    %v881 = vmul.u32 %v817, 2146121005
    %v882 = vmul.u32 %v818, 2146121005
    %v883 = vmul.u32 %v819, 2146121005
    %v884 = vmul.u32 %v820, 2146121005
    %v885 = vmul.u32 %v821, 2146121005
    %v886 = vmul.u32 %v822, 2146121005
    %v887 = vmul.u32 %v823, 2146121005
    %v888 = vmul.u32 %v824, 2146121005
    %v889 = vmul.u32 %v825, 2146121005
    %v890 = vmul.u32 %v826, 2146121005
    %v891 = vmul.u32 %v827, 2146121005
    %v892 = vmul.u32 %v828, 2146121005
    %v893 = vmul.u32 %v829, 2146121005
    %v894 = vmul.u32 %v830, 2146121005
    %v895 = vmul.u32 %v831, 2146121005
    %v896 = vmul.u32 %v832, 2146121005
    %v897 = vmul.u32 %v833, 2146121005
    %v898 = vmul.u32 %v834, 2146121005
    %v899 = vmul.u32 %v835, 2146121005
    %v900 = vmul.u32 %v836, 2146121005
    %v901 = vmul.u32 %v837, 2146121005
    %v902 = vmul.u32 %v838, 2146121005
    %v903 = vmul.u32 %v839, 2146121005
    %v904 = vmul.u32 %v840, 2146121005
    %v905 = vmul.u32 %v841, 2146121005
    %v906 = vmul.u32 %v842, 2146121005
    %v907 = vmul.u32 %v843, 2146121005
    %v908 = vmul.u32 %v844, 2146121005
    %v909 = vmul.u32 %v845, 2146121005
    %v910 = vmul.u32 %v846, 2146121005
    %v911 = vmul.u32 %v847, 2146121005
    %v912 = vmul.u32 %v848, 2146121005
    %v913 = vmul.u32 %v849, 2146121005
    %v914 = vmul.u32 %v850, 2146121005
    %v915 = vmul.u32 %v851, 2146121005
    %v916 = vmul.u32 %v852, 2146121005
    %v917 = vmul.u32 %v853, 2146121005
    %v918 = vmul.u32 %v854, 2146121005
    %v919 = vmul.u32 %v855, 2146121005
    %v920 = vmul.u32 %v856, 2146121005
    %v921 = vmul.u32 %v857, 2146121005
    %v922 = vmul.u32 %v858, 2146121005
    %v923 = vmul.u32 %v859, 2146121005
    %v924 = vmul.u32 %v860, 2146121005
    %v925 = vshrl.u32 %v861, 15
    %v926 = vshrl.u32 %v862, 15
    %v927 = vshrl.u32 %v863, 15
    %v928 = vshrl.u32 %v864, 15
    %v929 = vshrl.u32 %v865, 15
    %v930 = vshrl.u32 %v866, 15
    %v931 = vshrl.u32 %v867, 15
    %v932 = vshrl.u32 %v868, 15
    %v933 = vshrl.u32 %v869, 15
    %v934 = vshrl.u32 %v870, 15
    %v935 = vshrl.u32 %v871, 15
    %v936 = vshrl.u32 %v872, 15
    %v937 = vshrl.u32 %v873, 15
    %v938 = vshrl.u32 %v874, 15
    %v939 = vshrl.u32 %v875, 15
    %v940 = vshrl.u32 %v876, 15
    %v941 = vshrl.u32 %v877, 15
    %v942 = vshrl.u32 %v878, 15
    %v943 = vshrl.u32 %v879, 15
    %v944 = vshrl.u32 %v880, 15
    %v945 = vshrl.u32 %v881, 15
    %v946 = vshrl.u32 %v882, 15
    %v947 = vshrl.u32 %v883, 15
    %v948 = vshrl.u32 %v884, 15
    %v949 = vshrl.u32 %v885, 15
    %v950 = vshrl.u32 %v886, 15
    %v951 = vshrl.u32 %v887, 15
    %v952 = vshrl.u32 %v888, 15
    %v953 = vshrl.u32 %v889, 15
    %v954 = vshrl.u32 %v890, 15
    %v955 = vshrl.u32 %v891, 15
    %v956 = vshrl.u32 %v892, 15
    %v957 = vshrl.u32 %v893, 15
    %v958 = vshrl.u32 %v894, 15
    %v959 = vshrl.u32 %v895, 15
    %v960 = vshrl.u32 %v896, 15
    %v961 = vshrl.u32 %v897, 15
    %v962 = vshrl.u32 %v898, 15
    %v963 = vshrl.u32 %v899, 15
    %v964 = vshrl.u32 %v900, 15
    %v965 = vshrl.u32 %v901, 15
    %v966 = vshrl.u32 %v902, 15
    %v967 = vshrl.u32 %v903, 15
    %v968 = vshrl.u32 %v904, 15
    %v969 = vshrl.u32 %v905, 15
    %v970 = vshrl.u32 %v906, 15
    %v971 = vshrl.u32 %v907, 15
    %v972 = vshrl.u32 %v908, 15
    %v973 = vshrl.u32 %v909, 15
    %v974 = vshrl.u32 %v910, 15
    %v975 = vshrl.u32 %v911, 15
    %v976 = vshrl.u32 %v912, 15
    %v977 = vshrl.u32 %v913, 15
    %v978 = vshrl.u32 %v914, 15
    %v979 = vshrl.u32 %v915, 15
    %v980 = vshrl.u32 %v916, 15
    %v981 = vshrl.u32 %v917, 15
    %v982 = vshrl.u32 %v918, 15
    %v983 = vshrl.u32 %v919, 15
    %v984 = vshrl.u32 %v920, 15
    %v985 = vshrl.u32 %v921, 15
    %v986 = vshrl.u32 %v922, 15
    %v987 = vshrl.u32 %v923, 15
    %v988 = vshrl.u32 %v924, 15
    %v989 = vxor.u32 %v861, %v925
    %v990 = vxor.u32 %v862, %v926
    %v991 = vxor.u32 %v863, %v927
    %v992 = vxor.u32 %v864, %v928
    %v993 = vxor.u32 %v865, %v929
    %v994 = vxor.u32 %v866, %v930
    %v995 = vxor.u32 %v867, %v931
    %v996 = vxor.u32 %v868, %v932
    %v997 = vxor.u32 %v869, %v933
    %v998 = vxor.u32 %v870, %v934
    %v999 = vxor.u32 %v871, %v935
    %v1000 = vxor.u32 %v872, %v936
    %v1001 = vxor.u32 %v873, %v937
    %v1002 = vxor.u32 %v874, %v938
    %v1003 = vxor.u32 %v875, %v939
    %v1004 = vxor.u32 %v876, %v940
    %v1005 = vxor.u32 %v877, %v941
    %v1006 = vxor.u32 %v878, %v942
    %v1007 = vxor.u32 %v879, %v943
    %v1008 = vxor.u32 %v880, %v944
    %v1009 = vxor.u32 %v881, %v945
    %v1010 = vxor.u32 %v882, %v946
    %v1011 = vxor.u32 %v883, %v947
    %v1012 = vxor.u32 %v884, %v948
    %v1013 = vxor.u32 %v885, %v949
    %v1014 = vxor.u32 %v886, %v950
    %v1015 = vxor.u32 %v887, %v951
    %v1016 = vxor.u32 %v888, %v952
    %v1017 = vxor.u32 %v889, %v953
    %v1018 = vxor.u32 %v890, %v954
    %v1019 = vxor.u32 %v891, %v955
    %v1020 = vxor.u32 %v892, %v956
    %v1021 = vxor.u32 %v893, %v957
    %v1022 = vxor.u32 %v894, %v958
    %v1023 = vxor.u32 %v895, %v959
    %v1024 = vxor.u32 %v896, %v960
    %v1025 = vxor.u32 %v897, %v961
    %v1026 = vxor.u32 %v898, %v962
    %v1027 = vxor.u32 %v899, %v963
    %v1028 = vxor.u32 %v900, %v964
    %v1029 = vxor.u32 %v901, %v965
    %v1030 = vxor.u32 %v902, %v966
    %v1031 = vxor.u32 %v903, %v967
    %v1032 = vxor.u32 %v904, %v968
    %v1033 = vxor.u32 %v905, %v969
    %v1034 = vxor.u32 %v906, %v970
    %v1035 = vxor.u32 %v907, %v971
    %v1036 = vxor.u32 %v908, %v972
    %v1037 = vxor.u32 %v909, %v973
    %v1038 = vxor.u32 %v910, %v974
    %v1039 = vxor.u32 %v911, %v975
    %v1040 = vxor.u32 %v912, %v976
    %v1041 = vxor.u32 %v913, %v977
    %v1042 = vxor.u32 %v914, %v978
    %v1043 = vxor.u32 %v915, %v979
    %v1044 = vxor.u32 %v916, %v980
    %v1045 = vxor.u32 %v917, %v981
    %v1046 = vxor.u32 %v918, %v982
    %v1047 = vxor.u32 %v919, %v983
    %v1048 = vxor.u32 %v920, %v984
    %v1049 = vxor.u32 %v921, %v985
    %v1050 = vxor.u32 %v922, %v986
    %v1051 = vxor.u32 %v923, %v987
    %v1052 = vxor.u32 %v924, %v988
    %v1053 = vmul.u32 %v989, 2221713035
    %v1054 = vmul.u32 %v990, 2221713035
    %v1055 = vmul.u32 %v991, 2221713035
    %v1056 = vmul.u32 %v992, 2221713035
    %v1057 = vmul.u32 %v993, 2221713035
    %v1058 = vmul.u32 %v994, 2221713035
    %v1059 = vmul.u32 %v995, 2221713035
    %v1060 = vmul.u32 %v996, 2221713035
    %v1061 = vmul.u32 %v997, 2221713035
    %v1062 = vmul.u32 %v998, 2221713035
    %v1063 = vmul.u32 %v999, 2221713035
    %v1064 = vmul.u32 %v1000, 2221713035
    %v1065 = vmul.u32 %v1001, 2221713035
    %v1066 = vmul.u32 %v1002, 2221713035
    %v1067 = vmul.u32 %v1003, 2221713035
    %v1068 = vmul.u32 %v1004, 2221713035
    %v1069 = vmul.u32 %v1005, 2221713035
    %v1070 = vmul.u32 %v1006, 2221713035
    %v1071 = vmul.u32 %v1007, 2221713035
    %v1072 = vmul.u32 %v1008, 2221713035
    %v1073 = vmul.u32 %v1009, 2221713035
    %v1074 = vmul.u32 %v1010, 2221713035
    %v1075 = vmul.u32 %v1011, 2221713035
    %v1076 = vmul.u32 %v1012, 2221713035
    %v1077 = vmul.u32 %v1013, 2221713035
    %v1078 = vmul.u32 %v1014, 2221713035
    %v1079 = vmul.u32 %v1015, 2221713035
    %v1080 = vmul.u32 %v1016, 2221713035
    %v1081 = vmul.u32 %v1017, 2221713035
    %v1082 = vmul.u32 %v1018, 2221713035
    %v1083 = vmul.u32 %v1019, 2221713035
    %v1084 = vmul.u32 %v1020, 2221713035
    %v1085 = vmul.u32 %v1021, 2221713035
    %v1086 = vmul.u32 %v1022, 2221713035
    %v1087 = vmul.u32 %v1023, 2221713035
    %v1088 = vmul.u32 %v1024, 2221713035
    %v1089 = vmul.u32 %v1025, 2221713035
    %v1090 = vmul.u32 %v1026, 2221713035
    %v1091 = vmul.u32 %v1027, 2221713035
    %v1092 = vmul.u32 %v1028, 2221713035
    %v1093 = vmul.u32 %v1029, 2221713035
    %v1094 = vmul.u32 %v1030, 2221713035
    %v1095 = vmul.u32 %v1031, 2221713035
    %v1096 = vmul.u32 %v1032, 2221713035
    %v1097 = vmul.u32 %v1033, 2221713035
    %v1098 = vmul.u32 %v1034, 2221713035
    %v1099 = vmul.u32 %v1035, 2221713035
    %v1100 = vmul.u32 %v1036, 2221713035
    %v1101 = vmul.u32 %v1037, 2221713035
    %v1102 = vmul.u32 %v1038, 2221713035
    %v1103 = vmul.u32 %v1039, 2221713035
    %v1104 = vmul.u32 %v1040, 2221713035
    %v1105 = vmul.u32 %v1041, 2221713035
    %v1106 = vmul.u32 %v1042, 2221713035
    %v1107 = vmul.u32 %v1043, 2221713035
    %v1108 = vmul.u32 %v1044, 2221713035
    %v1109 = vmul.u32 %v1045, 2221713035
    %v1110 = vmul.u32 %v1046, 2221713035
    %v1111 = vmul.u32 %v1047, 2221713035
    %v1112 = vmul.u32 %v1048, 2221713035
    %v1113 = vmul.u32 %v1049, 2221713035
    %v1114 = vmul.u32 %v1050, 2221713035
    %v1115 = vmul.u32 %v1051, 2221713035
    %v1116 = vmul.u32 %v1052, 2221713035
    %v1117 = vshrl.u32 %v1053, 16
    %v1118 = vshrl.u32 %v1054, 16
    %v1119 = vshrl.u32 %v1055, 16
    %v1120 = vshrl.u32 %v1056, 16
    %v1121 = vshrl.u32 %v1057, 16
    %v1122 = vshrl.u32 %v1058, 16
    %v1123 = vshrl.u32 %v1059, 16
    %v1124 = vshrl.u32 %v1060, 16
    %v1125 = vshrl.u32 %v1061, 16
    %v1126 = vshrl.u32 %v1062, 16
    %v1127 = vshrl.u32 %v1063, 16
    %v1128 = vshrl.u32 %v1064, 16
    %v1129 = vshrl.u32 %v1065, 16
    %v1130 = vshrl.u32 %v1066, 16
    %v1131 = vshrl.u32 %v1067, 16
    %v1132 = vshrl.u32 %v1068, 16
    %v1133 = vshrl.u32 %v1069, 16
    %v1134 = vshrl.u32 %v1070, 16
    %v1135 = vshrl.u32 %v1071, 16
    %v1136 = vshrl.u32 %v1072, 16
    %v1137 = vshrl.u32 %v1073, 16
    %v1138 = vshrl.u32 %v1074, 16
    %v1139 = vshrl.u32 %v1075, 16
    %v1140 = vshrl.u32 %v1076, 16
    %v1141 = vshrl.u32 %v1077, 16
    %v1142 = vshrl.u32 %v1078, 16
    %v1143 = vshrl.u32 %v1079, 16
    %v1144 = vshrl.u32 %v1080, 16
    %v1145 = vshrl.u32 %v1081, 16
    %v1146 = vshrl.u32 %v1082, 16
    %v1147 = vshrl.u32 %v1083, 16
    %v1148 = vshrl.u32 %v1084, 16
    %v1149 = vshrl.u32 %v1085, 16
    %v1150 = vshrl.u32 %v1086, 16
    %v1151 = vshrl.u32 %v1087, 16
    %v1152 = vshrl.u32 %v1088, 16
    %v1153 = vshrl.u32 %v1089, 16
    %v1154 = vshrl.u32 %v1090, 16
    %v1155 = vshrl.u32 %v1091, 16
    %v1156 = vshrl.u32 %v1092, 16
    %v1157 = vshrl.u32 %v1093, 16
    %v1158 = vshrl.u32 %v1094, 16
    %v1159 = vshrl.u32 %v1095, 16
    %v1160 = vshrl.u32 %v1096, 16
    %v1161 = vshrl.u32 %v1097, 16
    %v1162 = vshrl.u32 %v1098, 16
    %v1163 = vshrl.u32 %v1099, 16
    %v1164 = vshrl.u32 %v1100, 16
    %v1165 = vshrl.u32 %v1101, 16
    %v1166 = vshrl.u32 %v1102, 16
    %v1167 = vshrl.u32 %v1103, 16
    %v1168 = vshrl.u32 %v1104, 16
    %v1169 = vshrl.u32 %v1105, 16
    %v1170 = vshrl.u32 %v1106, 16
    %v1171 = vshrl.u32 %v1107, 16
    %v1172 = vshrl.u32 %v1108, 16
    %v1173 = vshrl.u32 %v1109, 16
    %v1174 = vshrl.u32 %v1110, 16
    %v1175 = vshrl.u32 %v1111, 16
    %v1176 = vshrl.u32 %v1112, 16
    %v1177 = vshrl.u32 %v1113, 16
    %v1178 = vshrl.u32 %v1114, 16
    %v1179 = vshrl.u32 %v1115, 16
    %v1180 = vshrl.u32 %v1116, 16
    %v1181 = vxor.u32 %v1053, %v1117
    %v1182 = vxor.u32 %v1054, %v1118
    %v1183 = vxor.u32 %v1055, %v1119
    %v1184 = vxor.u32 %v1056, %v1120
    %v1185 = vxor.u32 %v1057, %v1121
    %v1186 = vxor.u32 %v1058, %v1122
    %v1187 = vxor.u32 %v1059, %v1123
    %v1188 = vxor.u32 %v1060, %v1124
    %v1189 = vxor.u32 %v1061, %v1125
    %v1190 = vxor.u32 %v1062, %v1126
    %v1191 = vxor.u32 %v1063, %v1127
    %v1192 = vxor.u32 %v1064, %v1128
    %v1193 = vxor.u32 %v1065, %v1129
    %v1194 = vxor.u32 %v1066, %v1130
    %v1195 = vxor.u32 %v1067, %v1131
    %v1196 = vxor.u32 %v1068, %v1132
    %v1197 = vxor.u32 %v1069, %v1133
    %v1198 = vxor.u32 %v1070, %v1134
    %v1199 = vxor.u32 %v1071, %v1135
    %v1200 = vxor.u32 %v1072, %v1136
    %v1201 = vxor.u32 %v1073, %v1137
    %v1202 = vxor.u32 %v1074, %v1138
    %v1203 = vxor.u32 %v1075, %v1139
    %v1204 = vxor.u32 %v1076, %v1140
    %v1205 = vxor.u32 %v1077, %v1141
    %v1206 = vxor.u32 %v1078, %v1142
    %v1207 = vxor.u32 %v1079, %v1143
    %v1208 = vxor.u32 %v1080, %v1144
    %v1209 = vxor.u32 %v1081, %v1145
    %v1210 = vxor.u32 %v1082, %v1146
    %v1211 = vxor.u32 %v1083, %v1147
    %v1212 = vxor.u32 %v1084, %v1148
    %v1213 = vxor.u32 %v1085, %v1149
    %v1214 = vxor.u32 %v1086, %v1150
    %v1215 = vxor.u32 %v1087, %v1151
    %v1216 = vxor.u32 %v1088, %v1152
    %v1217 = vxor.u32 %v1089, %v1153
    %v1218 = vxor.u32 %v1090, %v1154
    %v1219 = vxor.u32 %v1091, %v1155
    %v1220 = vxor.u32 %v1092, %v1156
    %v1221 = vxor.u32 %v1093, %v1157
    %v1222 = vxor.u32 %v1094, %v1158
    %v1223 = vxor.u32 %v1095, %v1159
    %v1224 = vxor.u32 %v1096, %v1160
    %v1225 = vxor.u32 %v1097, %v1161
    %v1226 = vxor.u32 %v1098, %v1162
    %v1227 = vxor.u32 %v1099, %v1163
    %v1228 = vxor.u32 %v1100, %v1164
    %v1229 = vxor.u32 %v1101, %v1165
    %v1230 = vxor.u32 %v1102, %v1166
    %v1231 = vxor.u32 %v1103, %v1167
    %v1232 = vxor.u32 %v1104, %v1168
    %v1233 = vxor.u32 %v1105, %v1169
    %v1234 = vxor.u32 %v1106, %v1170
    %v1235 = vxor.u32 %v1107, %v1171
    %v1236 = vxor.u32 %v1108, %v1172
    %v1237 = vxor.u32 %v1109, %v1173
    %v1238 = vxor.u32 %v1110, %v1174
    %v1239 = vxor.u32 %v1111, %v1175
    %v1240 = vxor.u32 %v1112, %v1176
    %v1241 = vxor.u32 %v1113, %v1177
    %v1242 = vxor.u32 %v1114, %v1178
    %v1243 = vxor.u32 %v1115, %v1179
    %v1244 = vxor.u32 %v1116, %v1180
    %vm1245 = vcmp.lt.u32.totalorder %v1181, 2147483648
    %vm1246 = vcmp.lt.u32.totalorder %v1182, 2147483648
    %vm1247 = vcmp.lt.u32.totalorder %v1183, 2147483648
    %vm1248 = vcmp.lt.u32.totalorder %v1184, 2147483648
    %vm1249 = vcmp.lt.u32.totalorder %v1185, 2147483648
    %vm1250 = vcmp.lt.u32.totalorder %v1186, 2147483648
    %vm1251 = vcmp.lt.u32.totalorder %v1187, 2147483648
    %vm1252 = vcmp.lt.u32.totalorder %v1188, 2147483648
    %vm1253 = vcmp.lt.u32.totalorder %v1189, 2147483648
    %vm1254 = vcmp.lt.u32.totalorder %v1190, 2147483648
    %vm1255 = vcmp.lt.u32.totalorder %v1191, 2147483648
    %vm1256 = vcmp.lt.u32.totalorder %v1192, 2147483648
    %vm1257 = vcmp.lt.u32.totalorder %v1193, 2147483648
    %vm1258 = vcmp.lt.u32.totalorder %v1194, 2147483648
    %vm1259 = vcmp.lt.u32.totalorder %v1195, 2147483648
    %vm1260 = vcmp.lt.u32.totalorder %v1196, 2147483648
    %vm1261 = vcmp.lt.u32.totalorder %v1197, 2147483648
    %vm1262 = vcmp.lt.u32.totalorder %v1198, 2147483648
    %vm1263 = vcmp.lt.u32.totalorder %v1199, 2147483648
    %vm1264 = vcmp.lt.u32.totalorder %v1200, 2147483648
    %vm1265 = vcmp.lt.u32.totalorder %v1201, 2147483648
    %vm1266 = vcmp.lt.u32.totalorder %v1202, 2147483648
    %vm1267 = vcmp.lt.u32.totalorder %v1203, 2147483648
    %vm1268 = vcmp.lt.u32.totalorder %v1204, 2147483648
    %vm1269 = vcmp.lt.u32.totalorder %v1205, 2147483648
    %vm1270 = vcmp.lt.u32.totalorder %v1206, 2147483648
    %vm1271 = vcmp.lt.u32.totalorder %v1207, 2147483648
    %vm1272 = vcmp.lt.u32.totalorder %v1208, 2147483648
    %vm1273 = vcmp.lt.u32.totalorder %v1209, 2147483648
    %vm1274 = vcmp.lt.u32.totalorder %v1210, 2147483648
    %vm1275 = vcmp.lt.u32.totalorder %v1211, 2147483648
    %vm1276 = vcmp.lt.u32.totalorder %v1212, 2147483648
    %vm1277 = vcmp.lt.u32.totalorder %v1213, 2147483648
    %vm1278 = vcmp.lt.u32.totalorder %v1214, 2147483648
    %vm1279 = vcmp.lt.u32.totalorder %v1215, 2147483648
    %vm1280 = vcmp.lt.u32.totalorder %v1216, 2147483648
    %vm1281 = vcmp.lt.u32.totalorder %v1217, 2147483648
    %vm1282 = vcmp.lt.u32.totalorder %v1218, 2147483648
    %vm1283 = vcmp.lt.u32.totalorder %v1219, 2147483648
    %vm1284 = vcmp.lt.u32.totalorder %v1220, 2147483648
    %vm1285 = vcmp.lt.u32.totalorder %v1221, 2147483648
    %vm1286 = vcmp.lt.u32.totalorder %v1222, 2147483648
    %vm1287 = vcmp.lt.u32.totalorder %v1223, 2147483648
    %vm1288 = vcmp.lt.u32.totalorder %v1224, 2147483648
    %vm1289 = vcmp.lt.u32.totalorder %v1225, 2147483648
    %vm1290 = vcmp.lt.u32.totalorder %v1226, 2147483648
    %vm1291 = vcmp.lt.u32.totalorder %v1227, 2147483648
    %vm1292 = vcmp.lt.u32.totalorder %v1228, 2147483648
    %vm1293 = vcmp.lt.u32.totalorder %v1229, 2147483648
    %vm1294 = vcmp.lt.u32.totalorder %v1230, 2147483648
    %vm1295 = vcmp.lt.u32.totalorder %v1231, 2147483648
    %vm1296 = vcmp.lt.u32.totalorder %v1232, 2147483648
    %vm1297 = vcmp.lt.u32.totalorder %v1233, 2147483648
    %vm1298 = vcmp.lt.u32.totalorder %v1234, 2147483648
    %vm1299 = vcmp.lt.u32.totalorder %v1235, 2147483648
    %vm1300 = vcmp.lt.u32.totalorder %v1236, 2147483648
    %vm1301 = vcmp.lt.u32.totalorder %v1237, 2147483648
    %vm1302 = vcmp.lt.u32.totalorder %v1238, 2147483648
    %vm1303 = vcmp.lt.u32.totalorder %v1239, 2147483648
    %vm1304 = vcmp.lt.u32.totalorder %v1240, 2147483648
    %vm1305 = vcmp.lt.u32.totalorder %v1241, 2147483648
    %vm1306 = vcmp.lt.u32.totalorder %v1242, 2147483648
    %vm1307 = vcmp.lt.u32.totalorder %v1243, 2147483648
    %vm1308 = vcmp.lt.u32.totalorder %v1244, 2147483648
    %v1309 = vmul.f32 %v437, 2.0
    %v1310 = vmul.f32 %v438, 2.0
    %v1311 = vmul.f32 %v439, 2.0
    %v1312 = vmul.f32 %v440, 2.0
    %v1313 = vmul.f32 %v441, 2.0
    %v1314 = vmul.f32 %v442, 2.0
    %v1315 = vmul.f32 %v443, 2.0
    %v1316 = vmul.f32 %v444, 2.0
    %v1317 = vmul.f32 %v445, 2.0
    %v1318 = vmul.f32 %v446, 2.0
    %v1319 = vmul.f32 %v447, 2.0
    %v1320 = vmul.f32 %v448, 2.0
    %v1321 = vmul.f32 %v449, 2.0
    %v1322 = vmul.f32 %v450, 2.0
    %v1323 = vmul.f32 %v451, 2.0
    %v1324 = vmul.f32 %v452, 2.0
    %v1325 = vmul.f32 %v453, 2.0
    %v1326 = vmul.f32 %v454, 2.0
    %v1327 = vmul.f32 %v455, 2.0
    %v1328 = vmul.f32 %v456, 2.0
    %v1329 = vmul.f32 %v457, 2.0
    %v1330 = vmul.f32 %v458, 2.0
    %v1331 = vmul.f32 %v459, 2.0
    %v1332 = vmul.f32 %v460, 2.0
    %v1333 = vmul.f32 %v461, 2.0
    %v1334 = vmul.f32 %v462, 2.0
    %v1335 = vmul.f32 %v463, 2.0
    %v1336 = vmul.f32 %v464, 2.0
    %v1337 = vmul.f32 %v465, 2.0
    %v1338 = vmul.f32 %v466, 2.0
    %v1339 = vmul.f32 %v467, 2.0
    %v1340 = vmul.f32 %v468, 2.0
    %v1341 = vmul.f32 %v469, 2.0
    %v1342 = vmul.f32 %v470, 2.0
    %v1343 = vmul.f32 %v471, 2.0
    %v1344 = vmul.f32 %v472, 2.0
    %v1345 = vmul.f32 %v473, 2.0
    %v1346 = vmul.f32 %v474, 2.0
    %v1347 = vmul.f32 %v475, 2.0
    %v1348 = vmul.f32 %v476, 2.0
    %v1349 = vmul.f32 %v477, 2.0
    %v1350 = vmul.f32 %v478, 2.0
    %v1351 = vmul.f32 %v479, 2.0
    %v1352 = vmul.f32 %v480, 2.0
    %v1353 = vmul.f32 %v481, 2.0
    %v1354 = vmul.f32 %v482, 2.0
    %v1355 = vmul.f32 %v483, 2.0
    %v1356 = vmul.f32 %v484, 2.0
    %v1357 = vmul.f32 %v485, 2.0
    %v1358 = vmul.f32 %v486, 2.0
    %v1359 = vmul.f32 %v487, 2.0
    %v1360 = vmul.f32 %v488, 2.0
    %v1361 = vmul.f32 %v489, 2.0
    %v1362 = vmul.f32 %v490, 2.0
    %v1363 = vmul.f32 %v491, 2.0
    %v1364 = vmul.f32 %v492, 2.0
    %v1365 = vmul.f32 %v493, 2.0
    %v1366 = vmul.f32 %v494, 2.0
    %v1367 = vmul.f32 %v495, 2.0
    %v1368 = vmul.f32 %v496, 2.0
    %v1369 = vmul.f32 %v497, 2.0
    %v1370 = vmul.f32 %v498, 2.0
    %v1371 = vmul.f32 %v499, 2.0
    %v1372 = vmul.f32 %v500, 2.0
    %v1373 = vsel %vm1245, %v1309, 0.0
    %v1374 = vsel %vm1246, %v1310, 0.0
    %v1375 = vsel %vm1247, %v1311, 0.0
    %v1376 = vsel %vm1248, %v1312, 0.0
    %v1377 = vsel %vm1249, %v1313, 0.0
    %v1378 = vsel %vm1250, %v1314, 0.0
    %v1379 = vsel %vm1251, %v1315, 0.0
    %v1380 = vsel %vm1252, %v1316, 0.0
    %v1381 = vsel %vm1253, %v1317, 0.0
    %v1382 = vsel %vm1254, %v1318, 0.0
    %v1383 = vsel %vm1255, %v1319, 0.0
    %v1384 = vsel %vm1256, %v1320, 0.0
    %v1385 = vsel %vm1257, %v1321, 0.0
    %v1386 = vsel %vm1258, %v1322, 0.0
    %v1387 = vsel %vm1259, %v1323, 0.0
    %v1388 = vsel %vm1260, %v1324, 0.0
    %v1389 = vsel %vm1261, %v1325, 0.0
    %v1390 = vsel %vm1262, %v1326, 0.0
    %v1391 = vsel %vm1263, %v1327, 0.0
    %v1392 = vsel %vm1264, %v1328, 0.0
    %v1393 = vsel %vm1265, %v1329, 0.0
    %v1394 = vsel %vm1266, %v1330, 0.0
    %v1395 = vsel %vm1267, %v1331, 0.0
    %v1396 = vsel %vm1268, %v1332, 0.0
    %v1397 = vsel %vm1269, %v1333, 0.0
    %v1398 = vsel %vm1270, %v1334, 0.0
    %v1399 = vsel %vm1271, %v1335, 0.0
    %v1400 = vsel %vm1272, %v1336, 0.0
    %v1401 = vsel %vm1273, %v1337, 0.0
    %v1402 = vsel %vm1274, %v1338, 0.0
    %v1403 = vsel %vm1275, %v1339, 0.0
    %v1404 = vsel %vm1276, %v1340, 0.0
    %v1405 = vsel %vm1277, %v1341, 0.0
    %v1406 = vsel %vm1278, %v1342, 0.0
    %v1407 = vsel %vm1279, %v1343, 0.0
    %v1408 = vsel %vm1280, %v1344, 0.0
    %v1409 = vsel %vm1281, %v1345, 0.0
    %v1410 = vsel %vm1282, %v1346, 0.0
    %v1411 = vsel %vm1283, %v1347, 0.0
    %v1412 = vsel %vm1284, %v1348, 0.0
    %v1413 = vsel %vm1285, %v1349, 0.0
    %v1414 = vsel %vm1286, %v1350, 0.0
    %v1415 = vsel %vm1287, %v1351, 0.0
    %v1416 = vsel %vm1288, %v1352, 0.0
    %v1417 = vsel %vm1289, %v1353, 0.0
    %v1418 = vsel %vm1290, %v1354, 0.0
    %v1419 = vsel %vm1291, %v1355, 0.0
    %v1420 = vsel %vm1292, %v1356, 0.0
    %v1421 = vsel %vm1293, %v1357, 0.0
    %v1422 = vsel %vm1294, %v1358, 0.0
    %v1423 = vsel %vm1295, %v1359, 0.0
    %v1424 = vsel %vm1296, %v1360, 0.0
    %v1425 = vsel %vm1297, %v1361, 0.0
    %v1426 = vsel %vm1298, %v1362, 0.0
    %v1427 = vsel %vm1299, %v1363, 0.0
    %v1428 = vsel %vm1300, %v1364, 0.0
    %v1429 = vsel %vm1301, %v1365, 0.0
    %v1430 = vsel %vm1302, %v1366, 0.0
    %v1431 = vsel %vm1303, %v1367, 0.0
    %v1432 = vsel %vm1304, %v1368, 0.0
    %v1433 = vsel %vm1305, %v1369, 0.0
    %v1434 = vsel %vm1306, %v1370, 0.0
    %v1435 = vsel %vm1307, %v1371, 0.0
    %v1436 = vsel %vm1308, %v1372, 0.0
    %v1437 = vpack.c.bf16 %v1375, %v1373
    %v1438 = vpack.c.bf16 %v1376, %v1374
    %v1439 = vpack.c.bf16 %v1379, %v1377
    %v1440 = vpack.c.bf16 %v1380, %v1378
    %v1441 = vpack.c.bf16 %v1383, %v1381
    %v1442 = vpack.c.bf16 %v1384, %v1382
    %v1443 = vpack.c.bf16 %v1387, %v1385
    %v1444 = vpack.c.bf16 %v1388, %v1386
    %v1445 = vpack.c.bf16 %v1391, %v1389
    %v1446 = vpack.c.bf16 %v1392, %v1390
    %v1447 = vpack.c.bf16 %v1395, %v1393
    %v1448 = vpack.c.bf16 %v1396, %v1394
    %v1449 = vpack.c.bf16 %v1399, %v1397
    %v1450 = vpack.c.bf16 %v1400, %v1398
    %v1451 = vpack.c.bf16 %v1403, %v1401
    %v1452 = vpack.c.bf16 %v1404, %v1402
    %v1453 = vpack.c.bf16 %v1407, %v1405
    %v1454 = vpack.c.bf16 %v1408, %v1406
    %v1455 = vpack.c.bf16 %v1411, %v1409
    %v1456 = vpack.c.bf16 %v1412, %v1410
    %v1457 = vpack.c.bf16 %v1415, %v1413
    %v1458 = vpack.c.bf16 %v1416, %v1414
    %v1459 = vpack.c.bf16 %v1419, %v1417
    %v1460 = vpack.c.bf16 %v1420, %v1418
    %v1461 = vpack.c.bf16 %v1423, %v1421
    %v1462 = vpack.c.bf16 %v1424, %v1422
    %v1463 = vpack.c.bf16 %v1427, %v1425
    %v1464 = vpack.c.bf16 %v1428, %v1426
    %v1465 = vpack.c.bf16 %v1431, %v1429
    %v1466 = vpack.c.bf16 %v1432, %v1430
    %v1467 = vpack.c.bf16 %v1435, %v1433
    %v1468 = vpack.c.bf16 %v1436, %v1434
    %v1469 = vld [vmem:[#allocation4] sm:$0xff]
    %v1470 = vld [vmem:[#allocation4 + $0x8] sm:$0xff]
    %v1471 = vld [vmem:[#allocation4 + $0x10] sm:$0xff]
    %v1472 = vld [vmem:[#allocation4 + $0x18] sm:$0xff]
    %v1473 = vld [vmem:[#allocation4 + $0x20] sm:$0xff]
    %v1474 = vld [vmem:[#allocation4 + $0x28] sm:$0xff]
    %v1475 = vld [vmem:[#allocation4 + $0x30] sm:$0xff]
    %v1476 = vld [vmem:[#allocation4 + $0x38] sm:$0xff]
    %v1477 = vld [vmem:[#allocation4 + $0x40] sm:$0xff]
    %v1478 = vld [vmem:[#allocation4 + $0x48] sm:$0xff]
    %v1479 = vld [vmem:[#allocation4 + $0x50] sm:$0xff]
    %v1480 = vld [vmem:[#allocation4 + $0x58] sm:$0xff]
    %v1481 = vld [vmem:[#allocation4 + $0x60] sm:$0xff]
    %v1482 = vld [vmem:[#allocation4 + $0x68] sm:$0xff]
    %v1483 = vld [vmem:[#allocation4 + $0x70] sm:$0xff]
    %v1484 = vld [vmem:[#allocation4 + $0x78] sm:$0xff]
    %v1485 = vld [vmem:[#allocation4 + $0x80] sm:$0xff]
    %v1486 = vld [vmem:[#allocation4 + $0x88] sm:$0xff]
    %v1487 = vld [vmem:[#allocation4 + $0x90] sm:$0xff]
    %v1488 = vld [vmem:[#allocation4 + $0x98] sm:$0xff]
    %v1489 = vld [vmem:[#allocation4 + $0xa0] sm:$0xff]
    %v1490 = vld [vmem:[#allocation4 + $0xa8] sm:$0xff]
    %v1491 = vld [vmem:[#allocation4 + $0xb0] sm:$0xff]
    %v1492 = vld [vmem:[#allocation4 + $0xb8] sm:$0xff]
    %v1493 = vld [vmem:[#allocation4 + $0xc0] sm:$0xff]
    %v1494 = vld [vmem:[#allocation4 + $0xc8] sm:$0xff]
    %v1495 = vld [vmem:[#allocation4 + $0xd0] sm:$0xff]
    %v1496 = vld [vmem:[#allocation4 + $0xd8] sm:$0xff]
    %v1497 = vld [vmem:[#allocation4 + $0xe0] sm:$0xff]
    %v1498 = vld [vmem:[#allocation4 + $0xe8] sm:$0xff]
    %v1499 = vld [vmem:[#allocation4 + $0xf0] sm:$0xff]
    %v1500 = vld [vmem:[#allocation4 + $0xf8] sm:$0xff]
    %v1501 = vld [vmem:[%s5] sm:$0x3]
    %v1503 = vlaneseq
    %v1504 = vshrl.u32 %v1503, 7
    %v1505 = vsub.s32 0, %v1504
    %v1506 = vrot.slane %v1501, %v1505
    %v1507 = vlaneseq
    %v1508 = vshrl.u32 %v1507, 7
    %v1509 = vsub.s32 1, %v1508
    %v1510 = vrot.slane %v1501, %v1509
    %v1545 = vunpack.c.l.b16 %v1469
    %v1546 = vunpack.c.h.b16 %v1469
    %v1547 = vunpack.c.l.b16 %v1470
    %v1548 = vunpack.c.h.b16 %v1470
    %v1549 = vunpack.c.l.b16 %v1471
    %v1550 = vunpack.c.h.b16 %v1471
    %v1551 = vunpack.c.l.b16 %v1472
    %v1552 = vunpack.c.h.b16 %v1472
    %v1553 = vunpack.c.l.b16 %v1473
    %v1554 = vunpack.c.h.b16 %v1473
    %v1555 = vunpack.c.l.b16 %v1474
    %v1556 = vunpack.c.h.b16 %v1474
    %v1557 = vunpack.c.l.b16 %v1475
    %v1558 = vunpack.c.h.b16 %v1475
    %v1559 = vunpack.c.l.b16 %v1476
    %v1560 = vunpack.c.h.b16 %v1476
    %v1561 = vunpack.c.l.b16 %v1477
    %v1562 = vunpack.c.h.b16 %v1477
    %v1563 = vunpack.c.l.b16 %v1478
    %v1564 = vunpack.c.h.b16 %v1478
    %v1565 = vunpack.c.l.b16 %v1479
    %v1566 = vunpack.c.h.b16 %v1479
    %v1567 = vunpack.c.l.b16 %v1480
    %v1568 = vunpack.c.h.b16 %v1480
    %v1569 = vunpack.c.l.b16 %v1481
    %v1570 = vunpack.c.h.b16 %v1481
    %v1571 = vunpack.c.l.b16 %v1482
    %v1572 = vunpack.c.h.b16 %v1482
    %v1573 = vunpack.c.l.b16 %v1483
    %v1574 = vunpack.c.h.b16 %v1483
    %v1575 = vunpack.c.l.b16 %v1484
    %v1576 = vunpack.c.h.b16 %v1484
    %v1577 = vunpack.c.l.b16 %v1485
    %v1578 = vunpack.c.h.b16 %v1485
    %v1579 = vunpack.c.l.b16 %v1486
    %v1580 = vunpack.c.h.b16 %v1486
    %v1581 = vunpack.c.l.b16 %v1487
    %v1582 = vunpack.c.h.b16 %v1487
    %v1583 = vunpack.c.l.b16 %v1488
    %v1584 = vunpack.c.h.b16 %v1488
    %v1585 = vunpack.c.l.b16 %v1489
    %v1586 = vunpack.c.h.b16 %v1489
    %v1587 = vunpack.c.l.b16 %v1490
    %v1588 = vunpack.c.h.b16 %v1490
    %v1589 = vunpack.c.l.b16 %v1491
    %v1590 = vunpack.c.h.b16 %v1491
    %v1591 = vunpack.c.l.b16 %v1492
    %v1592 = vunpack.c.h.b16 %v1492
    %v1593 = vunpack.c.l.b16 %v1493
    %v1594 = vunpack.c.h.b16 %v1493
    %v1595 = vunpack.c.l.b16 %v1494
    %v1596 = vunpack.c.h.b16 %v1494
    %v1597 = vunpack.c.l.b16 %v1495
    %v1598 = vunpack.c.h.b16 %v1495
    %v1599 = vunpack.c.l.b16 %v1496
    %v1600 = vunpack.c.h.b16 %v1496
    %v1601 = vunpack.c.l.b16 %v1497
    %v1602 = vunpack.c.h.b16 %v1497
    %v1603 = vunpack.c.l.b16 %v1498
    %v1604 = vunpack.c.h.b16 %v1498
    %v1605 = vunpack.c.l.b16 %v1499
    %v1606 = vunpack.c.h.b16 %v1499
    %v1607 = vunpack.c.l.b16 %v1500
    %v1608 = vunpack.c.h.b16 %v1500
    %v1609 = vpack.c.b16 %v1547, %v1545
    %v1610 = vpack.c.b16 %v1548, %v1546
    %v1611 = vpack.c.b16 %v1551, %v1549
    %v1612 = vpack.c.b16 %v1552, %v1550
    %v1613 = vpack.c.b16 %v1555, %v1553
    %v1614 = vpack.c.b16 %v1556, %v1554
    %v1615 = vpack.c.b16 %v1559, %v1557
    %v1616 = vpack.c.b16 %v1560, %v1558
    %v1617 = vpack.c.b16 %v1563, %v1561
    %v1618 = vpack.c.b16 %v1564, %v1562
    %v1619 = vpack.c.b16 %v1567, %v1565
    %v1620 = vpack.c.b16 %v1568, %v1566
    %v1621 = vpack.c.b16 %v1571, %v1569
    %v1622 = vpack.c.b16 %v1572, %v1570
    %v1623 = vpack.c.b16 %v1575, %v1573
    %v1624 = vpack.c.b16 %v1576, %v1574
    %v1625 = vpack.c.b16 %v1579, %v1577
    %v1626 = vpack.c.b16 %v1580, %v1578
    %v1627 = vpack.c.b16 %v1583, %v1581
    %v1628 = vpack.c.b16 %v1584, %v1582
    %v1629 = vpack.c.b16 %v1587, %v1585
    %v1630 = vpack.c.b16 %v1588, %v1586
    %v1631 = vpack.c.b16 %v1591, %v1589
    %v1632 = vpack.c.b16 %v1592, %v1590
    %v1633 = vpack.c.b16 %v1595, %v1593
    %v1634 = vpack.c.b16 %v1596, %v1594
    %v1635 = vpack.c.b16 %v1599, %v1597
    %v1636 = vpack.c.b16 %v1600, %v1598
    %v1637 = vpack.c.b16 %v1603, %v1601
    %v1638 = vpack.c.b16 %v1604, %v1602
    %v1639 = vpack.c.b16 %v1607, %v1605
    %v1640 = vpack.c.b16 %v1608, %v1606
    %1673 = vmatprep.subr.bf16.mxu0 %v1624
    %1674 = vmatpush1.bf16.msra.mxu0 %v1623
    %1675 = vmatprep.subr.bf16.mxu0 %v1622
    %1676 = vmatpush1.bf16.msra.mxu0 %v1621
    %1677 = vmatprep.subr.bf16.mxu0 %v1620
    %1678 = vmatpush1.bf16.msra.mxu0 %v1619
    %1679 = vmatprep.subr.bf16.mxu0 %v1618
    %1680 = vmatpush1.bf16.msra.mxu0 %v1617
    %1681 = vmatprep.subr.bf16.mxu0 %v1616
    %1682 = vmatpush1.bf16.msra.mxu0 %v1615
    %1683 = vmatprep.subr.bf16.mxu0 %v1614
    %1684 = vmatpush1.bf16.msra.mxu0 %v1613
    %1685 = vmatprep.subr.bf16.mxu0 %v1612
    %1686 = vmatpush1.bf16.msra.mxu0 %v1611
    %1687 = vmatprep.subr.bf16.mxu0 %v1610
    %1688 = vmatpush1.bf16.msra.mxu0 %v1609
    %1689 = vmatprep.subr.bf16.mxu0 %v1640
    %1690 = vmatpush2.bf16.msra.mxu0 %v1639
    %1691 = vmatprep.subr.bf16.mxu0 %v1638
    %1692 = vmatpush2.bf16.msra.mxu0 %v1637
    %1693 = vmatprep.subr.bf16.mxu0 %v1636
    %1694 = vmatpush2.bf16.msra.mxu0 %v1635
    %1695 = vmatprep.subr.bf16.mxu0 %v1634
    %1696 = vmatpush2.bf16.msra.mxu0 %v1633
    %1697 = vmatprep.subr.bf16.mxu0 %v1632
    %1698 = vmatpush2.bf16.msra.mxu0 %v1631
    %1699 = vmatprep.subr.bf16.mxu0 %v1630
    %1700 = vmatpush2.bf16.msra.mxu0 %v1629
    %1701 = vmatprep.subr.bf16.mxu0 %v1628
    %1702 = vmatpush2.bf16.msra.mxu0 %v1627
    %1703 = vmatprep.subr.bf16.mxu0 %v1626
    %1704 = vmatpush2.bf16.msra.mxu0 %v1625
    %1705 = vmatprep.mubr.bf16.mxu0 %v1438
    %1706 = vmatmul.mubr.bf16.gmra.mxu0 %v1437
    %v1707 = vpop.f32.mrf.mxu0
    %v1708 = vadd.f32 %v1506, %v1707
    %v1709 = vpop.f32.mrf.mxu0
    %v1710 = vadd.f32 %v1510, %v1709
    %v1711 = vpop.f32.mrf.mxu0
    %v1712 = vadd.f32 %v1506, %v1711
    %v1713 = vpop.f32.mrf.mxu0
    %v1714 = vadd.f32 %v1510, %v1713
    %1715 = vmatprep.mubr.bf16.mxu0 %v1440
    %1716 = vmatmul.mubr.bf16.gmra.mxu0 %v1439
    %v1717 = vpop.f32.mrf.mxu0
    %v1718 = vadd.f32 %v1506, %v1717
    %v1719 = vpop.f32.mrf.mxu0
    %v1720 = vadd.f32 %v1510, %v1719
    %v1721 = vpop.f32.mrf.mxu0
    %v1722 = vadd.f32 %v1506, %v1721
    %v1723 = vpop.f32.mrf.mxu0
    %v1724 = vadd.f32 %v1510, %v1723
    %1725 = vmatprep.mubr.bf16.mxu0 %v1442
    %1726 = vmatmul.mubr.bf16.gmra.mxu0 %v1441
    %v1727 = vpop.f32.mrf.mxu0
    %v1728 = vadd.f32 %v1506, %v1727
    %v1729 = vpop.f32.mrf.mxu0
    %v1730 = vadd.f32 %v1510, %v1729
    %v1731 = vpop.f32.mrf.mxu0
    %v1732 = vadd.f32 %v1506, %v1731
    %v1733 = vpop.f32.mrf.mxu0
    %v1734 = vadd.f32 %v1510, %v1733
    %1735 = vmatprep.mubr.bf16.mxu0 %v1444
    %1736 = vmatmul.mubr.bf16.gmra.mxu0 %v1443
    %v1737 = vpop.f32.mrf.mxu0
    %v1738 = vadd.f32 %v1506, %v1737
    %v1739 = vpop.f32.mrf.mxu0
    %v1740 = vadd.f32 %v1510, %v1739
    %v1741 = vpop.f32.mrf.mxu0
    %v1742 = vadd.f32 %v1506, %v1741
    %v1743 = vpop.f32.mrf.mxu0
    %v1744 = vadd.f32 %v1510, %v1743
    %1745 = vmatprep.mubr.bf16.mxu0 %v1446
    %1746 = vmatmul.mubr.bf16.gmra.mxu0 %v1445
    %v1747 = vpop.f32.mrf.mxu0
    %v1748 = vadd.f32 %v1506, %v1747
    %v1749 = vpop.f32.mrf.mxu0
    %v1750 = vadd.f32 %v1510, %v1749
    %v1751 = vpop.f32.mrf.mxu0
    %v1752 = vadd.f32 %v1506, %v1751
    %v1753 = vpop.f32.mrf.mxu0
    %v1754 = vadd.f32 %v1510, %v1753
    %1755 = vmatprep.mubr.bf16.mxu0 %v1448
    %1756 = vmatmul.mubr.bf16.gmra.mxu0 %v1447
    %v1757 = vpop.f32.mrf.mxu0
    %v1758 = vadd.f32 %v1506, %v1757
    %v1759 = vpop.f32.mrf.mxu0
    %v1760 = vadd.f32 %v1510, %v1759
    %v1761 = vpop.f32.mrf.mxu0
    %v1762 = vadd.f32 %v1506, %v1761
    %v1763 = vpop.f32.mrf.mxu0
    %v1764 = vadd.f32 %v1510, %v1763
    %1765 = vmatprep.mubr.bf16.mxu0 %v1450
    %1766 = vmatmul.mubr.bf16.gmra.mxu0 %v1449
    %v1767 = vpop.f32.mrf.mxu0
    %v1768 = vadd.f32 %v1506, %v1767
    %v1769 = vpop.f32.mrf.mxu0
    %v1770 = vadd.f32 %v1510, %v1769
    %v1771 = vpop.f32.mrf.mxu0
    %v1772 = vadd.f32 %v1506, %v1771
    %v1773 = vpop.f32.mrf.mxu0
    %v1774 = vadd.f32 %v1510, %v1773
    %1775 = vmatprep.mubr.bf16.mxu0 %v1452
    %1776 = vmatmul.mubr.bf16.gmra.mxu0 %v1451
    %v1777 = vpop.f32.mrf.mxu0
    %v1778 = vadd.f32 %v1506, %v1777
    %v1779 = vpop.f32.mrf.mxu0
    %v1780 = vadd.f32 %v1510, %v1779
    %v1781 = vpop.f32.mrf.mxu0
    %v1782 = vadd.f32 %v1506, %v1781
    %v1783 = vpop.f32.mrf.mxu0
    %v1784 = vadd.f32 %v1510, %v1783
    %1785 = vmatprep.mubr.bf16.mxu0 %v1454
    %1786 = vmatmul.mubr.bf16.gmra.mxu0 %v1453
    %v1787 = vpop.f32.mrf.mxu0
    %v1788 = vadd.f32 %v1506, %v1787
    %v1789 = vpop.f32.mrf.mxu0
    %v1790 = vadd.f32 %v1510, %v1789
    %v1791 = vpop.f32.mrf.mxu0
    %v1792 = vadd.f32 %v1506, %v1791
    %v1793 = vpop.f32.mrf.mxu0
    %v1794 = vadd.f32 %v1510, %v1793
    %1795 = vmatprep.mubr.bf16.mxu0 %v1456
    %1796 = vmatmul.mubr.bf16.gmra.mxu0 %v1455
    %v1797 = vpop.f32.mrf.mxu0
    %v1798 = vadd.f32 %v1506, %v1797
    %v1799 = vpop.f32.mrf.mxu0
    %v1800 = vadd.f32 %v1510, %v1799
    %v1801 = vpop.f32.mrf.mxu0
    %v1802 = vadd.f32 %v1506, %v1801
    %v1803 = vpop.f32.mrf.mxu0
    %v1804 = vadd.f32 %v1510, %v1803
    %1805 = vmatprep.mubr.bf16.mxu0 %v1458
    %1806 = vmatmul.mubr.bf16.gmra.mxu0 %v1457
    %v1807 = vpop.f32.mrf.mxu0
    %v1808 = vadd.f32 %v1506, %v1807
    %v1809 = vpop.f32.mrf.mxu0
    %v1810 = vadd.f32 %v1510, %v1809
    %v1811 = vpop.f32.mrf.mxu0
    %v1812 = vadd.f32 %v1506, %v1811
    %v1813 = vpop.f32.mrf.mxu0
    %v1814 = vadd.f32 %v1510, %v1813
    %1815 = vmatprep.mubr.bf16.mxu0 %v1460
    %1816 = vmatmul.mubr.bf16.gmra.mxu0 %v1459
    %v1817 = vpop.f32.mrf.mxu0
    %v1818 = vadd.f32 %v1506, %v1817
    %v1819 = vpop.f32.mrf.mxu0
    %v1820 = vadd.f32 %v1510, %v1819
    %v1821 = vpop.f32.mrf.mxu0
    %v1822 = vadd.f32 %v1506, %v1821
    %v1823 = vpop.f32.mrf.mxu0
    %v1824 = vadd.f32 %v1510, %v1823
    %1825 = vmatprep.mubr.bf16.mxu0 %v1462
    %1826 = vmatmul.mubr.bf16.gmra.mxu0 %v1461
    %v1827 = vpop.f32.mrf.mxu0
    %v1828 = vadd.f32 %v1506, %v1827
    %v1829 = vpop.f32.mrf.mxu0
    %v1830 = vadd.f32 %v1510, %v1829
    %v1831 = vpop.f32.mrf.mxu0
    %v1832 = vadd.f32 %v1506, %v1831
    %v1833 = vpop.f32.mrf.mxu0
    %v1834 = vadd.f32 %v1510, %v1833
    %1835 = vmatprep.mubr.bf16.mxu0 %v1464
    %1836 = vmatmul.mubr.bf16.gmra.mxu0 %v1463
    %v1837 = vpop.f32.mrf.mxu0
    %v1838 = vadd.f32 %v1506, %v1837
    %v1839 = vpop.f32.mrf.mxu0
    %v1840 = vadd.f32 %v1510, %v1839
    %v1841 = vpop.f32.mrf.mxu0
    %v1842 = vadd.f32 %v1506, %v1841
    %v1843 = vpop.f32.mrf.mxu0
    %v1844 = vadd.f32 %v1510, %v1843
    %1845 = vmatprep.mubr.bf16.mxu0 %v1466
    %1846 = vmatmul.mubr.bf16.gmra.mxu0 %v1465
    %v1847 = vpop.f32.mrf.mxu0
    %v1848 = vadd.f32 %v1506, %v1847
    %v1849 = vpop.f32.mrf.mxu0
    %v1850 = vadd.f32 %v1510, %v1849
    %v1851 = vpop.f32.mrf.mxu0
    %v1852 = vadd.f32 %v1506, %v1851
    %v1853 = vpop.f32.mrf.mxu0
    %v1854 = vadd.f32 %v1510, %v1853
    %1855 = vmatprep.mubr.bf16.mxu0 %v1468
    %1856 = vmatmul.mubr.bf16.gmra.mxu0 %v1467
    %v1857 = vpop.f32.mrf.mxu0
    %v1858 = vadd.f32 %v1506, %v1857
    %v1859 = vpop.f32.mrf.mxu0
    %v1860 = vadd.f32 %v1510, %v1859
    %v1861 = vpop.f32.mrf.mxu0
    %v1862 = vadd.f32 %v1506, %v1861
    %v1863 = vpop.f32.mrf.mxu0
    %v1864 = vadd.f32 %v1510, %v1863
    %1865 = vdwg.mxu0
    %v1866 = vmax.f32 %v1708, 0.0
    %v1867 = vmax.f32 %v1710, 0.0
    %v1868 = vmax.f32 %v1712, 0.0
    %v1869 = vmax.f32 %v1714, 0.0
    %v1870 = vmax.f32 %v1718, 0.0
    %v1871 = vmax.f32 %v1720, 0.0
    %v1872 = vmax.f32 %v1722, 0.0
    %v1873 = vmax.f32 %v1724, 0.0
    %v1874 = vmax.f32 %v1728, 0.0
    %v1875 = vmax.f32 %v1730, 0.0
    %v1876 = vmax.f32 %v1732, 0.0
    %v1877 = vmax.f32 %v1734, 0.0
    %v1878 = vmax.f32 %v1738, 0.0
    %v1879 = vmax.f32 %v1740, 0.0
    %v1880 = vmax.f32 %v1742, 0.0
    %v1881 = vmax.f32 %v1744, 0.0
    %v1882 = vmax.f32 %v1748, 0.0
    %v1883 = vmax.f32 %v1750, 0.0
    %v1884 = vmax.f32 %v1752, 0.0
    %v1885 = vmax.f32 %v1754, 0.0
    %v1886 = vmax.f32 %v1758, 0.0
    %v1887 = vmax.f32 %v1760, 0.0
    %v1888 = vmax.f32 %v1762, 0.0
    %v1889 = vmax.f32 %v1764, 0.0
    %v1890 = vmax.f32 %v1768, 0.0
    %v1891 = vmax.f32 %v1770, 0.0
    %v1892 = vmax.f32 %v1772, 0.0
    %v1893 = vmax.f32 %v1774, 0.0
    %v1894 = vmax.f32 %v1778, 0.0
    %v1895 = vmax.f32 %v1780, 0.0
    %v1896 = vmax.f32 %v1782, 0.0
    %v1897 = vmax.f32 %v1784, 0.0
    %v1898 = vmax.f32 %v1788, 0.0
    %v1899 = vmax.f32 %v1790, 0.0
    %v1900 = vmax.f32 %v1792, 0.0
    %v1901 = vmax.f32 %v1794, 0.0
    %v1902 = vmax.f32 %v1798, 0.0
    %v1903 = vmax.f32 %v1800, 0.0
    %v1904 = vmax.f32 %v1802, 0.0
    %v1905 = vmax.f32 %v1804, 0.0
    %v1906 = vmax.f32 %v1808, 0.0
    %v1907 = vmax.f32 %v1810, 0.0
    %v1908 = vmax.f32 %v1812, 0.0
    %v1909 = vmax.f32 %v1814, 0.0
    %v1910 = vmax.f32 %v1818, 0.0
    %v1911 = vmax.f32 %v1820, 0.0
    %v1912 = vmax.f32 %v1822, 0.0
    %v1913 = vmax.f32 %v1824, 0.0
    %v1914 = vmax.f32 %v1828, 0.0
    %v1915 = vmax.f32 %v1830, 0.0
    %v1916 = vmax.f32 %v1832, 0.0
    %v1917 = vmax.f32 %v1834, 0.0
    %v1918 = vmax.f32 %v1838, 0.0
    %v1919 = vmax.f32 %v1840, 0.0
    %v1920 = vmax.f32 %v1842, 0.0
    %v1921 = vmax.f32 %v1844, 0.0
    %v1922 = vmax.f32 %v1848, 0.0
    %v1923 = vmax.f32 %v1850, 0.0
    %v1924 = vmax.f32 %v1852, 0.0
    %v1925 = vmax.f32 %v1854, 0.0
    %v1926 = vmax.f32 %v1858, 0.0
    %v1927 = vmax.f32 %v1860, 0.0
    %v1928 = vmax.f32 %v1862, 0.0
    %v1929 = vmax.f32 %v1864, 0.0
    %v1930 = vadd.s32 %v604, 1
    %v1931 = vadd.s32 %v605, 1
    %v1932 = vadd.s32 %v606, 1
    %v1933 = vadd.s32 %v607, 1
    %v1934 = vadd.s32 %v608, 1
    %v1935 = vadd.s32 %v609, 1
    %v1936 = vadd.s32 %v610, 1
    %v1937 = vadd.s32 %v611, 1
    %v1938 = vadd.s32 %v612, 1
    %v1939 = vadd.s32 %v613, 1
    %v1940 = vadd.s32 %v614, 1
    %v1941 = vadd.s32 %v615, 1
    %v1942 = vadd.s32 %v616, 1
    %v1943 = vadd.s32 %v617, 1
    %v1944 = vadd.s32 %v618, 1
    %v1945 = vadd.s32 %v619, 1
    %v1946 = vadd.s32 %v620, 1
    %v1947 = vadd.s32 %v621, 1
    %v1948 = vadd.s32 %v622, 1
    %v1949 = vadd.s32 %v623, 1
    %v1950 = vadd.s32 %v624, 1
    %v1951 = vadd.s32 %v625, 1
    %v1952 = vadd.s32 %v626, 1
    %v1953 = vadd.s32 %v627, 1
    %v1954 = vadd.s32 %v628, 1
    %v1955 = vadd.s32 %v629, 1
    %v1956 = vadd.s32 %v630, 1
    %v1957 = vadd.s32 %v631, 1
    %v1958 = vadd.s32 %v632, 1
    %v1959 = vadd.s32 %v633, 1
    %v1960 = vadd.s32 %v634, 1
    %v1961 = vadd.s32 %v635, 1
    %v1962 = vadd.s32 %v636, 1
    %v1963 = vadd.s32 %v637, 1
    %v1964 = vadd.s32 %v638, 1
    %v1965 = vadd.s32 %v639, 1
    %v1966 = vadd.s32 %v640, 1
    %v1967 = vadd.s32 %v641, 1
    %v1968 = vadd.s32 %v642, 1
    %v1969 = vadd.s32 %v643, 1
    %v1970 = vadd.s32 %v644, 1
    %v1971 = vadd.s32 %v645, 1
    %v1972 = vadd.s32 %v646, 1
    %v1973 = vadd.s32 %v647, 1
    %v1974 = vadd.s32 %v648, 1
    %v1975 = vadd.s32 %v649, 1
    %v1976 = vadd.s32 %v650, 1
    %v1977 = vadd.s32 %v651, 1
    %v1978 = vadd.s32 %v652, 1
    %v1979 = vadd.s32 %v653, 1
    %v1980 = vadd.s32 %v654, 1
    %v1981 = vadd.s32 %v655, 1
    %v1982 = vadd.s32 %v656, 1
    %v1983 = vadd.s32 %v657, 1
    %v1984 = vadd.s32 %v658, 1
    %v1985 = vadd.s32 %v659, 1
    %v1986 = vadd.s32 %v660, 1
    %v1987 = vadd.s32 %v661, 1
    %v1988 = vadd.s32 %v662, 1
    %v1989 = vadd.s32 %v663, 1
    %v1990 = vadd.s32 %v664, 1
    %v1991 = vadd.s32 %v665, 1
    %v1992 = vadd.s32 %v666, 1
    %v1993 = vadd.s32 %v667, 1
    %v1994 = vadd.s32 %v1930, %v668
    %v1995 = vadd.s32 %v1931, %v668
    %v1996 = vadd.s32 %v1932, %v668
    %v1997 = vadd.s32 %v1933, %v668
    %v1998 = vadd.s32 %v1934, %v668
    %v1999 = vadd.s32 %v1935, %v668
    %v2000 = vadd.s32 %v1936, %v668
    %v2001 = vadd.s32 %v1937, %v668
    %v2002 = vadd.s32 %v1938, %v668
    %v2003 = vadd.s32 %v1939, %v668
    %v2004 = vadd.s32 %v1940, %v668
    %v2005 = vadd.s32 %v1941, %v668
    %v2006 = vadd.s32 %v1942, %v668
    %v2007 = vadd.s32 %v1943, %v668
    %v2008 = vadd.s32 %v1944, %v668
    %v2009 = vadd.s32 %v1945, %v668
    %v2010 = vadd.s32 %v1946, %v668
    %v2011 = vadd.s32 %v1947, %v668
    %v2012 = vadd.s32 %v1948, %v668
    %v2013 = vadd.s32 %v1949, %v668
    %v2014 = vadd.s32 %v1950, %v668
    %v2015 = vadd.s32 %v1951, %v668
    %v2016 = vadd.s32 %v1952, %v668
    %v2017 = vadd.s32 %v1953, %v668
    %v2018 = vadd.s32 %v1954, %v668
    %v2019 = vadd.s32 %v1955, %v668
    %v2020 = vadd.s32 %v1956, %v668
    %v2021 = vadd.s32 %v1957, %v668
    %v2022 = vadd.s32 %v1958, %v668
    %v2023 = vadd.s32 %v1959, %v668
    %v2024 = vadd.s32 %v1960, %v668
    %v2025 = vadd.s32 %v1961, %v668
    %v2026 = vadd.s32 %v1962, %v668
    %v2027 = vadd.s32 %v1963, %v668
    %v2028 = vadd.s32 %v1964, %v668
    %v2029 = vadd.s32 %v1965, %v668
    %v2030 = vadd.s32 %v1966, %v668
    %v2031 = vadd.s32 %v1967, %v668
    %v2032 = vadd.s32 %v1968, %v668
    %v2033 = vadd.s32 %v1969, %v668
    %v2034 = vadd.s32 %v1970, %v668
    %v2035 = vadd.s32 %v1971, %v668
    %v2036 = vadd.s32 %v1972, %v668
    %v2037 = vadd.s32 %v1973, %v668
    %v2038 = vadd.s32 %v1974, %v668
    %v2039 = vadd.s32 %v1975, %v668
    %v2040 = vadd.s32 %v1976, %v668
    %v2041 = vadd.s32 %v1977, %v668
    %v2042 = vadd.s32 %v1978, %v668
    %v2043 = vadd.s32 %v1979, %v668
    %v2044 = vadd.s32 %v1980, %v668
    %v2045 = vadd.s32 %v1981, %v668
    %v2046 = vadd.s32 %v1982, %v668
    %v2047 = vadd.s32 %v1983, %v668
    %v2048 = vadd.s32 %v1984, %v668
    %v2049 = vadd.s32 %v1985, %v668
    %v2050 = vadd.s32 %v1986, %v668
    %v2051 = vadd.s32 %v1987, %v668
    %v2052 = vadd.s32 %v1988, %v668
    %v2053 = vadd.s32 %v1989, %v668
    %v2054 = vadd.s32 %v1990, %v668
    %v2055 = vadd.s32 %v1991, %v668
    %v2056 = vadd.s32 %v1992, %v668
    %v2057 = vadd.s32 %v1993, %v668
    %v2058 = vshrl.u32 %v1994, 16
    %v2059 = vshrl.u32 %v1995, 16
    %v2060 = vshrl.u32 %v1996, 16
    %v2061 = vshrl.u32 %v1997, 16
    %v2062 = vshrl.u32 %v1998, 16
    %v2063 = vshrl.u32 %v1999, 16
    %v2064 = vshrl.u32 %v2000, 16
    %v2065 = vshrl.u32 %v2001, 16
    %v2066 = vshrl.u32 %v2002, 16
    %v2067 = vshrl.u32 %v2003, 16
    %v2068 = vshrl.u32 %v2004, 16
    %v2069 = vshrl.u32 %v2005, 16
    %v2070 = vshrl.u32 %v2006, 16
    %v2071 = vshrl.u32 %v2007, 16
    %v2072 = vshrl.u32 %v2008, 16
    %v2073 = vshrl.u32 %v2009, 16
    %v2074 = vshrl.u32 %v2010, 16
    %v2075 = vshrl.u32 %v2011, 16
    %v2076 = vshrl.u32 %v2012, 16
    %v2077 = vshrl.u32 %v2013, 16
    %v2078 = vshrl.u32 %v2014, 16
    %v2079 = vshrl.u32 %v2015, 16
    %v2080 = vshrl.u32 %v2016, 16
    %v2081 = vshrl.u32 %v2017, 16
    %v2082 = vshrl.u32 %v2018, 16
    %v2083 = vshrl.u32 %v2019, 16
    %v2084 = vshrl.u32 %v2020, 16
    %v2085 = vshrl.u32 %v2021, 16
    %v2086 = vshrl.u32 %v2022, 16
    %v2087 = vshrl.u32 %v2023, 16
    %v2088 = vshrl.u32 %v2024, 16
    %v2089 = vshrl.u32 %v2025, 16
    %v2090 = vshrl.u32 %v2026, 16
    %v2091 = vshrl.u32 %v2027, 16
    %v2092 = vshrl.u32 %v2028, 16
    %v2093 = vshrl.u32 %v2029, 16
    %v2094 = vshrl.u32 %v2030, 16
    %v2095 = vshrl.u32 %v2031, 16
    %v2096 = vshrl.u32 %v2032, 16
    %v2097 = vshrl.u32 %v2033, 16
    %v2098 = vshrl.u32 %v2034, 16
    %v2099 = vshrl.u32 %v2035, 16
    %v2100 = vshrl.u32 %v2036, 16
    %v2101 = vshrl.u32 %v2037, 16
    %v2102 = vshrl.u32 %v2038, 16
    %v2103 = vshrl.u32 %v2039, 16
    %v2104 = vshrl.u32 %v2040, 16
    %v2105 = vshrl.u32 %v2041, 16
    %v2106 = vshrl.u32 %v2042, 16
    %v2107 = vshrl.u32 %v2043, 16
    %v2108 = vshrl.u32 %v2044, 16
    %v2109 = vshrl.u32 %v2045, 16
    %v2110 = vshrl.u32 %v2046, 16
    %v2111 = vshrl.u32 %v2047, 16
    %v2112 = vshrl.u32 %v2048, 16
    %v2113 = vshrl.u32 %v2049, 16
    %v2114 = vshrl.u32 %v2050, 16
    %v2115 = vshrl.u32 %v2051, 16
    %v2116 = vshrl.u32 %v2052, 16
    %v2117 = vshrl.u32 %v2053, 16
    %v2118 = vshrl.u32 %v2054, 16
    %v2119 = vshrl.u32 %v2055, 16
    %v2120 = vshrl.u32 %v2056, 16
    %v2121 = vshrl.u32 %v2057, 16
    %v2122 = vxor.u32 %v1994, %v2058
    %v2123 = vxor.u32 %v1995, %v2059
    %v2124 = vxor.u32 %v1996, %v2060
    %v2125 = vxor.u32 %v1997, %v2061
    %v2126 = vxor.u32 %v1998, %v2062
    %v2127 = vxor.u32 %v1999, %v2063
    %v2128 = vxor.u32 %v2000, %v2064
    %v2129 = vxor.u32 %v2001, %v2065
    %v2130 = vxor.u32 %v2002, %v2066
    %v2131 = vxor.u32 %v2003, %v2067
    %v2132 = vxor.u32 %v2004, %v2068
    %v2133 = vxor.u32 %v2005, %v2069
    %v2134 = vxor.u32 %v2006, %v2070
    %v2135 = vxor.u32 %v2007, %v2071
    %v2136 = vxor.u32 %v2008, %v2072
    %v2137 = vxor.u32 %v2009, %v2073
    %v2138 = vxor.u32 %v2010, %v2074
    %v2139 = vxor.u32 %v2011, %v2075
    %v2140 = vxor.u32 %v2012, %v2076
    %v2141 = vxor.u32 %v2013, %v2077
    %v2142 = vxor.u32 %v2014, %v2078
    %v2143 = vxor.u32 %v2015, %v2079
    %v2144 = vxor.u32 %v2016, %v2080
    %v2145 = vxor.u32 %v2017, %v2081
    %v2146 = vxor.u32 %v2018, %v2082
    %v2147 = vxor.u32 %v2019, %v2083
    %v2148 = vxor.u32 %v2020, %v2084
    %v2149 = vxor.u32 %v2021, %v2085
    %v2150 = vxor.u32 %v2022, %v2086
    %v2151 = vxor.u32 %v2023, %v2087
    %v2152 = vxor.u32 %v2024, %v2088
    %v2153 = vxor.u32 %v2025, %v2089
    %v2154 = vxor.u32 %v2026, %v2090
    %v2155 = vxor.u32 %v2027, %v2091
    %v2156 = vxor.u32 %v2028, %v2092
    %v2157 = vxor.u32 %v2029, %v2093
    %v2158 = vxor.u32 %v2030, %v2094
    %v2159 = vxor.u32 %v2031, %v2095
    %v2160 = vxor.u32 %v2032, %v2096
    %v2161 = vxor.u32 %v2033, %v2097
    %v2162 = vxor.u32 %v2034, %v2098
    %v2163 = vxor.u32 %v2035, %v2099
    %v2164 = vxor.u32 %v2036, %v2100
    %v2165 = vxor.u32 %v2037, %v2101
    %v2166 = vxor.u32 %v2038, %v2102
    %v2167 = vxor.u32 %v2039, %v2103
    %v2168 = vxor.u32 %v2040, %v2104
    %v2169 = vxor.u32 %v2041, %v2105
    %v2170 = vxor.u32 %v2042, %v2106
    %v2171 = vxor.u32 %v2043, %v2107
    %v2172 = vxor.u32 %v2044, %v2108
    %v2173 = vxor.u32 %v2045, %v2109
    %v2174 = vxor.u32 %v2046, %v2110
    %v2175 = vxor.u32 %v2047, %v2111
    %v2176 = vxor.u32 %v2048, %v2112
    %v2177 = vxor.u32 %v2049, %v2113
    %v2178 = vxor.u32 %v2050, %v2114
    %v2179 = vxor.u32 %v2051, %v2115
    %v2180 = vxor.u32 %v2052, %v2116
    %v2181 = vxor.u32 %v2053, %v2117
    %v2182 = vxor.u32 %v2054, %v2118
    %v2183 = vxor.u32 %v2055, %v2119
    %v2184 = vxor.u32 %v2056, %v2120
    %v2185 = vxor.u32 %v2057, %v2121
    %v2186 = vmul.u32 %v2122, 2146121005
    %v2187 = vmul.u32 %v2123, 2146121005
    %v2188 = vmul.u32 %v2124, 2146121005
    %v2189 = vmul.u32 %v2125, 2146121005
    %v2190 = vmul.u32 %v2126, 2146121005
    %v2191 = vmul.u32 %v2127, 2146121005
    %v2192 = vmul.u32 %v2128, 2146121005
    %v2193 = vmul.u32 %v2129, 2146121005
    %v2194 = vmul.u32 %v2130, 2146121005
    %v2195 = vmul.u32 %v2131, 2146121005
    %v2196 = vmul.u32 %v2132, 2146121005
    %v2197 = vmul.u32 %v2133, 2146121005
    %v2198 = vmul.u32 %v2134, 2146121005
    %v2199 = vmul.u32 %v2135, 2146121005
    %v2200 = vmul.u32 %v2136, 2146121005
    %v2201 = vmul.u32 %v2137, 2146121005
    %v2202 = vmul.u32 %v2138, 2146121005
    %v2203 = vmul.u32 %v2139, 2146121005
    %v2204 = vmul.u32 %v2140, 2146121005
    %v2205 = vmul.u32 %v2141, 2146121005
    %v2206 = vmul.u32 %v2142, 2146121005
    %v2207 = vmul.u32 %v2143, 2146121005
    %v2208 = vmul.u32 %v2144, 2146121005
    %v2209 = vmul.u32 %v2145, 2146121005
    %v2210 = vmul.u32 %v2146, 2146121005
    %v2211 = vmul.u32 %v2147, 2146121005
    %v2212 = vmul.u32 %v2148, 2146121005
    %v2213 = vmul.u32 %v2149, 2146121005
    %v2214 = vmul.u32 %v2150, 2146121005
    %v2215 = vmul.u32 %v2151, 2146121005
    %v2216 = vmul.u32 %v2152, 2146121005
    %v2217 = vmul.u32 %v2153, 2146121005
    %v2218 = vmul.u32 %v2154, 2146121005
    %v2219 = vmul.u32 %v2155, 2146121005
    %v2220 = vmul.u32 %v2156, 2146121005
    %v2221 = vmul.u32 %v2157, 2146121005
    %v2222 = vmul.u32 %v2158, 2146121005
    %v2223 = vmul.u32 %v2159, 2146121005
    %v2224 = vmul.u32 %v2160, 2146121005
    %v2225 = vmul.u32 %v2161, 2146121005
    %v2226 = vmul.u32 %v2162, 2146121005
    %v2227 = vmul.u32 %v2163, 2146121005
    %v2228 = vmul.u32 %v2164, 2146121005
    %v2229 = vmul.u32 %v2165, 2146121005
    %v2230 = vmul.u32 %v2166, 2146121005
    %v2231 = vmul.u32 %v2167, 2146121005
    %v2232 = vmul.u32 %v2168, 2146121005
    %v2233 = vmul.u32 %v2169, 2146121005
    %v2234 = vmul.u32 %v2170, 2146121005
    %v2235 = vmul.u32 %v2171, 2146121005
    %v2236 = vmul.u32 %v2172, 2146121005
    %v2237 = vmul.u32 %v2173, 2146121005
    %v2238 = vmul.u32 %v2174, 2146121005
    %v2239 = vmul.u32 %v2175, 2146121005
    %v2240 = vmul.u32 %v2176, 2146121005
    %v2241 = vmul.u32 %v2177, 2146121005
    %v2242 = vmul.u32 %v2178, 2146121005
    %v2243 = vmul.u32 %v2179, 2146121005
    %v2244 = vmul.u32 %v2180, 2146121005
    %v2245 = vmul.u32 %v2181, 2146121005
    %v2246 = vmul.u32 %v2182, 2146121005
    %v2247 = vmul.u32 %v2183, 2146121005
    %v2248 = vmul.u32 %v2184, 2146121005
    %v2249 = vmul.u32 %v2185, 2146121005
    %v2250 = vshrl.u32 %v2186, 15
    %v2251 = vshrl.u32 %v2187, 15
    %v2252 = vshrl.u32 %v2188, 15
    %v2253 = vshrl.u32 %v2189, 15
    %v2254 = vshrl.u32 %v2190, 15
    %v2255 = vshrl.u32 %v2191, 15
    %v2256 = vshrl.u32 %v2192, 15
    %v2257 = vshrl.u32 %v2193, 15
    %v2258 = vshrl.u32 %v2194, 15
    %v2259 = vshrl.u32 %v2195, 15
    %v2260 = vshrl.u32 %v2196, 15
    %v2261 = vshrl.u32 %v2197, 15
    %v2262 = vshrl.u32 %v2198, 15
    %v2263 = vshrl.u32 %v2199, 15
    %v2264 = vshrl.u32 %v2200, 15
    %v2265 = vshrl.u32 %v2201, 15
    %v2266 = vshrl.u32 %v2202, 15
    %v2267 = vshrl.u32 %v2203, 15
    %v2268 = vshrl.u32 %v2204, 15
    %v2269 = vshrl.u32 %v2205, 15
    %v2270 = vshrl.u32 %v2206, 15
    %v2271 = vshrl.u32 %v2207, 15
    %v2272 = vshrl.u32 %v2208, 15
    %v2273 = vshrl.u32 %v2209, 15
    %v2274 = vshrl.u32 %v2210, 15
    %v2275 = vshrl.u32 %v2211, 15
    %v2276 = vshrl.u32 %v2212, 15
    %v2277 = vshrl.u32 %v2213, 15
    %v2278 = vshrl.u32 %v2214, 15
    %v2279 = vshrl.u32 %v2215, 15
    %v2280 = vshrl.u32 %v2216, 15
    %v2281 = vshrl.u32 %v2217, 15
    %v2282 = vshrl.u32 %v2218, 15
    %v2283 = vshrl.u32 %v2219, 15
    %v2284 = vshrl.u32 %v2220, 15
    %v2285 = vshrl.u32 %v2221, 15
    %v2286 = vshrl.u32 %v2222, 15
    %v2287 = vshrl.u32 %v2223, 15
    %v2288 = vshrl.u32 %v2224, 15
    %v2289 = vshrl.u32 %v2225, 15
    %v2290 = vshrl.u32 %v2226, 15
    %v2291 = vshrl.u32 %v2227, 15
    %v2292 = vshrl.u32 %v2228, 15
    %v2293 = vshrl.u32 %v2229, 15
    %v2294 = vshrl.u32 %v2230, 15
    %v2295 = vshrl.u32 %v2231, 15
    %v2296 = vshrl.u32 %v2232, 15
    %v2297 = vshrl.u32 %v2233, 15
    %v2298 = vshrl.u32 %v2234, 15
    %v2299 = vshrl.u32 %v2235, 15
    %v2300 = vshrl.u32 %v2236, 15
    %v2301 = vshrl.u32 %v2237, 15
    %v2302 = vshrl.u32 %v2238, 15
    %v2303 = vshrl.u32 %v2239, 15
    %v2304 = vshrl.u32 %v2240, 15
    %v2305 = vshrl.u32 %v2241, 15
    %v2306 = vshrl.u32 %v2242, 15
    %v2307 = vshrl.u32 %v2243, 15
    %v2308 = vshrl.u32 %v2244, 15
    %v2309 = vshrl.u32 %v2245, 15
    %v2310 = vshrl.u32 %v2246, 15
    %v2311 = vshrl.u32 %v2247, 15
    %v2312 = vshrl.u32 %v2248, 15
    %v2313 = vshrl.u32 %v2249, 15
    %v2314 = vxor.u32 %v2186, %v2250
    %v2315 = vxor.u32 %v2187, %v2251
    %v2316 = vxor.u32 %v2188, %v2252
    %v2317 = vxor.u32 %v2189, %v2253
    %v2318 = vxor.u32 %v2190, %v2254
    %v2319 = vxor.u32 %v2191, %v2255
    %v2320 = vxor.u32 %v2192, %v2256
    %v2321 = vxor.u32 %v2193, %v2257
    %v2322 = vxor.u32 %v2194, %v2258
    %v2323 = vxor.u32 %v2195, %v2259
    %v2324 = vxor.u32 %v2196, %v2260
    %v2325 = vxor.u32 %v2197, %v2261
    %v2326 = vxor.u32 %v2198, %v2262
    %v2327 = vxor.u32 %v2199, %v2263
    %v2328 = vxor.u32 %v2200, %v2264
    %v2329 = vxor.u32 %v2201, %v2265
    %v2330 = vxor.u32 %v2202, %v2266
    %v2331 = vxor.u32 %v2203, %v2267
    %v2332 = vxor.u32 %v2204, %v2268
    %v2333 = vxor.u32 %v2205, %v2269
    %v2334 = vxor.u32 %v2206, %v2270
    %v2335 = vxor.u32 %v2207, %v2271
    %v2336 = vxor.u32 %v2208, %v2272
    %v2337 = vxor.u32 %v2209, %v2273
    %v2338 = vxor.u32 %v2210, %v2274
    %v2339 = vxor.u32 %v2211, %v2275
    %v2340 = vxor.u32 %v2212, %v2276
    %v2341 = vxor.u32 %v2213, %v2277
    %v2342 = vxor.u32 %v2214, %v2278
    %v2343 = vxor.u32 %v2215, %v2279
    %v2344 = vxor.u32 %v2216, %v2280
    %v2345 = vxor.u32 %v2217, %v2281
    %v2346 = vxor.u32 %v2218, %v2282
    %v2347 = vxor.u32 %v2219, %v2283
    %v2348 = vxor.u32 %v2220, %v2284
    %v2349 = vxor.u32 %v2221, %v2285
    %v2350 = vxor.u32 %v2222, %v2286
    %v2351 = vxor.u32 %v2223, %v2287
    %v2352 = vxor.u32 %v2224, %v2288
    %v2353 = vxor.u32 %v2225, %v2289
    %v2354 = vxor.u32 %v2226, %v2290
    %v2355 = vxor.u32 %v2227, %v2291
    %v2356 = vxor.u32 %v2228, %v2292
    %v2357 = vxor.u32 %v2229, %v2293
    %v2358 = vxor.u32 %v2230, %v2294
    %v2359 = vxor.u32 %v2231, %v2295
    %v2360 = vxor.u32 %v2232, %v2296
    %v2361 = vxor.u32 %v2233, %v2297
    %v2362 = vxor.u32 %v2234, %v2298
    %v2363 = vxor.u32 %v2235, %v2299
    %v2364 = vxor.u32 %v2236, %v2300
    %v2365 = vxor.u32 %v2237, %v2301
    %v2366 = vxor.u32 %v2238, %v2302
    %v2367 = vxor.u32 %v2239, %v2303
    %v2368 = vxor.u32 %v2240, %v2304
    %v2369 = vxor.u32 %v2241, %v2305
    %v2370 = vxor.u32 %v2242, %v2306
    %v2371 = vxor.u32 %v2243, %v2307
    %v2372 = vxor.u32 %v2244, %v2308
    %v2373 = vxor.u32 %v2245, %v2309
    %v2374 = vxor.u32 %v2246, %v2310
    %v2375 = vxor.u32 %v2247, %v2311
    %v2376 = vxor.u32 %v2248, %v2312
    %v2377 = vxor.u32 %v2249, %v2313
    %v2378 = vmul.u32 %v2314, 2221713035
    %v2379 = vmul.u32 %v2315, 2221713035
    %v2380 = vmul.u32 %v2316, 2221713035
    %v2381 = vmul.u32 %v2317, 2221713035
    %v2382 = vmul.u32 %v2318, 2221713035
    %v2383 = vmul.u32 %v2319, 2221713035
    %v2384 = vmul.u32 %v2320, 2221713035
    %v2385 = vmul.u32 %v2321, 2221713035
    %v2386 = vmul.u32 %v2322, 2221713035
    %v2387 = vmul.u32 %v2323, 2221713035
    %v2388 = vmul.u32 %v2324, 2221713035
    %v2389 = vmul.u32 %v2325, 2221713035
    %v2390 = vmul.u32 %v2326, 2221713035
    %v2391 = vmul.u32 %v2327, 2221713035
    %v2392 = vmul.u32 %v2328, 2221713035
    %v2393 = vmul.u32 %v2329, 2221713035
    %v2394 = vmul.u32 %v2330, 2221713035
    %v2395 = vmul.u32 %v2331, 2221713035
    %v2396 = vmul.u32 %v2332, 2221713035
    %v2397 = vmul.u32 %v2333, 2221713035
    %v2398 = vmul.u32 %v2334, 2221713035
    %v2399 = vmul.u32 %v2335, 2221713035
    %v2400 = vmul.u32 %v2336, 2221713035
    %v2401 = vmul.u32 %v2337, 2221713035
    %v2402 = vmul.u32 %v2338, 2221713035
    %v2403 = vmul.u32 %v2339, 2221713035
    %v2404 = vmul.u32 %v2340, 2221713035
    %v2405 = vmul.u32 %v2341, 2221713035
    %v2406 = vmul.u32 %v2342, 2221713035
    %v2407 = vmul.u32 %v2343, 2221713035
    %v2408 = vmul.u32 %v2344, 2221713035
    %v2409 = vmul.u32 %v2345, 2221713035
    %v2410 = vmul.u32 %v2346, 2221713035
    %v2411 = vmul.u32 %v2347, 2221713035
    %v2412 = vmul.u32 %v2348, 2221713035
    %v2413 = vmul.u32 %v2349, 2221713035
    %v2414 = vmul.u32 %v2350, 2221713035
    %v2415 = vmul.u32 %v2351, 2221713035
    %v2416 = vmul.u32 %v2352, 2221713035
    %v2417 = vmul.u32 %v2353, 2221713035
    %v2418 = vmul.u32 %v2354, 2221713035
    %v2419 = vmul.u32 %v2355, 2221713035
    %v2420 = vmul.u32 %v2356, 2221713035
    %v2421 = vmul.u32 %v2357, 2221713035
    %v2422 = vmul.u32 %v2358, 2221713035
    %v2423 = vmul.u32 %v2359, 2221713035
    %v2424 = vmul.u32 %v2360, 2221713035
    %v2425 = vmul.u32 %v2361, 2221713035
    %v2426 = vmul.u32 %v2362, 2221713035
    %v2427 = vmul.u32 %v2363, 2221713035
    %v2428 = vmul.u32 %v2364, 2221713035
    %v2429 = vmul.u32 %v2365, 2221713035
    %v2430 = vmul.u32 %v2366, 2221713035
    %v2431 = vmul.u32 %v2367, 2221713035
    %v2432 = vmul.u32 %v2368, 2221713035
    %v2433 = vmul.u32 %v2369, 2221713035
    %v2434 = vmul.u32 %v2370, 2221713035
    %v2435 = vmul.u32 %v2371, 2221713035
    %v2436 = vmul.u32 %v2372, 2221713035
    %v2437 = vmul.u32 %v2373, 2221713035
    %v2438 = vmul.u32 %v2374, 2221713035
    %v2439 = vmul.u32 %v2375, 2221713035
    %v2440 = vmul.u32 %v2376, 2221713035
    %v2441 = vmul.u32 %v2377, 2221713035
    %v2442 = vshrl.u32 %v2378, 16
    %v2443 = vshrl.u32 %v2379, 16
    %v2444 = vshrl.u32 %v2380, 16
    %v2445 = vshrl.u32 %v2381, 16
    %v2446 = vshrl.u32 %v2382, 16
    %v2447 = vshrl.u32 %v2383, 16
    %v2448 = vshrl.u32 %v2384, 16
    %v2449 = vshrl.u32 %v2385, 16
    %v2450 = vshrl.u32 %v2386, 16
    %v2451 = vshrl.u32 %v2387, 16
    %v2452 = vshrl.u32 %v2388, 16
    %v2453 = vshrl.u32 %v2389, 16
    %v2454 = vshrl.u32 %v2390, 16
    %v2455 = vshrl.u32 %v2391, 16
    %v2456 = vshrl.u32 %v2392, 16
    %v2457 = vshrl.u32 %v2393, 16
    %v2458 = vshrl.u32 %v2394, 16
    %v2459 = vshrl.u32 %v2395, 16
    %v2460 = vshrl.u32 %v2396, 16
    %v2461 = vshrl.u32 %v2397, 16
    %v2462 = vshrl.u32 %v2398, 16
    %v2463 = vshrl.u32 %v2399, 16
    %v2464 = vshrl.u32 %v2400, 16
    %v2465 = vshrl.u32 %v2401, 16
    %v2466 = vshrl.u32 %v2402, 16
    %v2467 = vshrl.u32 %v2403, 16
    %v2468 = vshrl.u32 %v2404, 16
    %v2469 = vshrl.u32 %v2405, 16
    %v2470 = vshrl.u32 %v2406, 16
    %v2471 = vshrl.u32 %v2407, 16
    %v2472 = vshrl.u32 %v2408, 16
    %v2473 = vshrl.u32 %v2409, 16
    %v2474 = vshrl.u32 %v2410, 16
    %v2475 = vshrl.u32 %v2411, 16
    %v2476 = vshrl.u32 %v2412, 16
    %v2477 = vshrl.u32 %v2413, 16
    %v2478 = vshrl.u32 %v2414, 16
    %v2479 = vshrl.u32 %v2415, 16
    %v2480 = vshrl.u32 %v2416, 16
    %v2481 = vshrl.u32 %v2417, 16
    %v2482 = vshrl.u32 %v2418, 16
    %v2483 = vshrl.u32 %v2419, 16
    %v2484 = vshrl.u32 %v2420, 16
    %v2485 = vshrl.u32 %v2421, 16
    %v2486 = vshrl.u32 %v2422, 16
    %v2487 = vshrl.u32 %v2423, 16
    %v2488 = vshrl.u32 %v2424, 16
    %v2489 = vshrl.u32 %v2425, 16
    %v2490 = vshrl.u32 %v2426, 16
    %v2491 = vshrl.u32 %v2427, 16
    %v2492 = vshrl.u32 %v2428, 16
    %v2493 = vshrl.u32 %v2429, 16
    %v2494 = vshrl.u32 %v2430, 16
    %v2495 = vshrl.u32 %v2431, 16
    %v2496 = vshrl.u32 %v2432, 16
    %v2497 = vshrl.u32 %v2433, 16
    %v2498 = vshrl.u32 %v2434, 16
    %v2499 = vshrl.u32 %v2435, 16
    %v2500 = vshrl.u32 %v2436, 16
    %v2501 = vshrl.u32 %v2437, 16
    %v2502 = vshrl.u32 %v2438, 16
    %v2503 = vshrl.u32 %v2439, 16
    %v2504 = vshrl.u32 %v2440, 16
    %v2505 = vshrl.u32 %v2441, 16
    %v2506 = vxor.u32 %v2378, %v2442
    %v2507 = vxor.u32 %v2379, %v2443
    %v2508 = vxor.u32 %v2380, %v2444
    %v2509 = vxor.u32 %v2381, %v2445
    %v2510 = vxor.u32 %v2382, %v2446
    %v2511 = vxor.u32 %v2383, %v2447
    %v2512 = vxor.u32 %v2384, %v2448
    %v2513 = vxor.u32 %v2385, %v2449
    %v2514 = vxor.u32 %v2386, %v2450
    %v2515 = vxor.u32 %v2387, %v2451
    %v2516 = vxor.u32 %v2388, %v2452
    %v2517 = vxor.u32 %v2389, %v2453
    %v2518 = vxor.u32 %v2390, %v2454
    %v2519 = vxor.u32 %v2391, %v2455
    %v2520 = vxor.u32 %v2392, %v2456
    %v2521 = vxor.u32 %v2393, %v2457
    %v2522 = vxor.u32 %v2394, %v2458
    %v2523 = vxor.u32 %v2395, %v2459
    %v2524 = vxor.u32 %v2396, %v2460
    %v2525 = vxor.u32 %v2397, %v2461
    %v2526 = vxor.u32 %v2398, %v2462
    %v2527 = vxor.u32 %v2399, %v2463
    %v2528 = vxor.u32 %v2400, %v2464
    %v2529 = vxor.u32 %v2401, %v2465
    %v2530 = vxor.u32 %v2402, %v2466
    %v2531 = vxor.u32 %v2403, %v2467
    %v2532 = vxor.u32 %v2404, %v2468
    %v2533 = vxor.u32 %v2405, %v2469
    %v2534 = vxor.u32 %v2406, %v2470
    %v2535 = vxor.u32 %v2407, %v2471
    %v2536 = vxor.u32 %v2408, %v2472
    %v2537 = vxor.u32 %v2409, %v2473
    %v2538 = vxor.u32 %v2410, %v2474
    %v2539 = vxor.u32 %v2411, %v2475
    %v2540 = vxor.u32 %v2412, %v2476
    %v2541 = vxor.u32 %v2413, %v2477
    %v2542 = vxor.u32 %v2414, %v2478
    %v2543 = vxor.u32 %v2415, %v2479
    %v2544 = vxor.u32 %v2416, %v2480
    %v2545 = vxor.u32 %v2417, %v2481
    %v2546 = vxor.u32 %v2418, %v2482
    %v2547 = vxor.u32 %v2419, %v2483
    %v2548 = vxor.u32 %v2420, %v2484
    %v2549 = vxor.u32 %v2421, %v2485
    %v2550 = vxor.u32 %v2422, %v2486
    %v2551 = vxor.u32 %v2423, %v2487
    %v2552 = vxor.u32 %v2424, %v2488
    %v2553 = vxor.u32 %v2425, %v2489
    %v2554 = vxor.u32 %v2426, %v2490
    %v2555 = vxor.u32 %v2427, %v2491
    %v2556 = vxor.u32 %v2428, %v2492
    %v2557 = vxor.u32 %v2429, %v2493
    %v2558 = vxor.u32 %v2430, %v2494
    %v2559 = vxor.u32 %v2431, %v2495
    %v2560 = vxor.u32 %v2432, %v2496
    %v2561 = vxor.u32 %v2433, %v2497
    %v2562 = vxor.u32 %v2434, %v2498
    %v2563 = vxor.u32 %v2435, %v2499
    %v2564 = vxor.u32 %v2436, %v2500
    %v2565 = vxor.u32 %v2437, %v2501
    %v2566 = vxor.u32 %v2438, %v2502
    %v2567 = vxor.u32 %v2439, %v2503
    %v2568 = vxor.u32 %v2440, %v2504
    %v2569 = vxor.u32 %v2441, %v2505
    %vm2570 = vcmp.lt.u32.totalorder %v2506, 2147483648
    %vm2571 = vcmp.lt.u32.totalorder %v2507, 2147483648
    %vm2572 = vcmp.lt.u32.totalorder %v2508, 2147483648
    %vm2573 = vcmp.lt.u32.totalorder %v2509, 2147483648
    %vm2574 = vcmp.lt.u32.totalorder %v2510, 2147483648
    %vm2575 = vcmp.lt.u32.totalorder %v2511, 2147483648
    %vm2576 = vcmp.lt.u32.totalorder %v2512, 2147483648
    %vm2577 = vcmp.lt.u32.totalorder %v2513, 2147483648
    %vm2578 = vcmp.lt.u32.totalorder %v2514, 2147483648
    %vm2579 = vcmp.lt.u32.totalorder %v2515, 2147483648
    %vm2580 = vcmp.lt.u32.totalorder %v2516, 2147483648
    %vm2581 = vcmp.lt.u32.totalorder %v2517, 2147483648
    %vm2582 = vcmp.lt.u32.totalorder %v2518, 2147483648
    %vm2583 = vcmp.lt.u32.totalorder %v2519, 2147483648
    %vm2584 = vcmp.lt.u32.totalorder %v2520, 2147483648
    %vm2585 = vcmp.lt.u32.totalorder %v2521, 2147483648
    %vm2586 = vcmp.lt.u32.totalorder %v2522, 2147483648
    %vm2587 = vcmp.lt.u32.totalorder %v2523, 2147483648
    %vm2588 = vcmp.lt.u32.totalorder %v2524, 2147483648
    %vm2589 = vcmp.lt.u32.totalorder %v2525, 2147483648
    %vm2590 = vcmp.lt.u32.totalorder %v2526, 2147483648
    %vm2591 = vcmp.lt.u32.totalorder %v2527, 2147483648
    %vm2592 = vcmp.lt.u32.totalorder %v2528, 2147483648
    %vm2593 = vcmp.lt.u32.totalorder %v2529, 2147483648
    %vm2594 = vcmp.lt.u32.totalorder %v2530, 2147483648
    %vm2595 = vcmp.lt.u32.totalorder %v2531, 2147483648
    %vm2596 = vcmp.lt.u32.totalorder %v2532, 2147483648
    %vm2597 = vcmp.lt.u32.totalorder %v2533, 2147483648
    %vm2598 = vcmp.lt.u32.totalorder %v2534, 2147483648
    %vm2599 = vcmp.lt.u32.totalorder %v2535, 2147483648
    %vm2600 = vcmp.lt.u32.totalorder %v2536, 2147483648
    %vm2601 = vcmp.lt.u32.totalorder %v2537, 2147483648
    %vm2602 = vcmp.lt.u32.totalorder %v2538, 2147483648
    %vm2603 = vcmp.lt.u32.totalorder %v2539, 2147483648
    %vm2604 = vcmp.lt.u32.totalorder %v2540, 2147483648
    %vm2605 = vcmp.lt.u32.totalorder %v2541, 2147483648
    %vm2606 = vcmp.lt.u32.totalorder %v2542, 2147483648
    %vm2607 = vcmp.lt.u32.totalorder %v2543, 2147483648
    %vm2608 = vcmp.lt.u32.totalorder %v2544, 2147483648
    %vm2609 = vcmp.lt.u32.totalorder %v2545, 2147483648
    %vm2610 = vcmp.lt.u32.totalorder %v2546, 2147483648
    %vm2611 = vcmp.lt.u32.totalorder %v2547, 2147483648
    %vm2612 = vcmp.lt.u32.totalorder %v2548, 2147483648
    %vm2613 = vcmp.lt.u32.totalorder %v2549, 2147483648
    %vm2614 = vcmp.lt.u32.totalorder %v2550, 2147483648
    %vm2615 = vcmp.lt.u32.totalorder %v2551, 2147483648
    %vm2616 = vcmp.lt.u32.totalorder %v2552, 2147483648
    %vm2617 = vcmp.lt.u32.totalorder %v2553, 2147483648
    %vm2618 = vcmp.lt.u32.totalorder %v2554, 2147483648
    %vm2619 = vcmp.lt.u32.totalorder %v2555, 2147483648
    %vm2620 = vcmp.lt.u32.totalorder %v2556, 2147483648
    %vm2621 = vcmp.lt.u32.totalorder %v2557, 2147483648
    %vm2622 = vcmp.lt.u32.totalorder %v2558, 2147483648
    %vm2623 = vcmp.lt.u32.totalorder %v2559, 2147483648
    %vm2624 = vcmp.lt.u32.totalorder %v2560, 2147483648
    %vm2625 = vcmp.lt.u32.totalorder %v2561, 2147483648
    %vm2626 = vcmp.lt.u32.totalorder %v2562, 2147483648
    %vm2627 = vcmp.lt.u32.totalorder %v2563, 2147483648
    %vm2628 = vcmp.lt.u32.totalorder %v2564, 2147483648
    %vm2629 = vcmp.lt.u32.totalorder %v2565, 2147483648
    %vm2630 = vcmp.lt.u32.totalorder %v2566, 2147483648
    %vm2631 = vcmp.lt.u32.totalorder %v2567, 2147483648
    %vm2632 = vcmp.lt.u32.totalorder %v2568, 2147483648
    %vm2633 = vcmp.lt.u32.totalorder %v2569, 2147483648
    %v2634 = vmul.f32 %v1866, 2.0
    %v2635 = vmul.f32 %v1867, 2.0
    %v2636 = vmul.f32 %v1868, 2.0
    %v2637 = vmul.f32 %v1869, 2.0
    %v2638 = vmul.f32 %v1870, 2.0
    %v2639 = vmul.f32 %v1871, 2.0
    %v2640 = vmul.f32 %v1872, 2.0
    %v2641 = vmul.f32 %v1873, 2.0
    %v2642 = vmul.f32 %v1874, 2.0
    %v2643 = vmul.f32 %v1875, 2.0
    %v2644 = vmul.f32 %v1876, 2.0
    %v2645 = vmul.f32 %v1877, 2.0
    %v2646 = vmul.f32 %v1878, 2.0
    %v2647 = vmul.f32 %v1879, 2.0
    %v2648 = vmul.f32 %v1880, 2.0
    %v2649 = vmul.f32 %v1881, 2.0
    %v2650 = vmul.f32 %v1882, 2.0
    %v2651 = vmul.f32 %v1883, 2.0
    %v2652 = vmul.f32 %v1884, 2.0
    %v2653 = vmul.f32 %v1885, 2.0
    %v2654 = vmul.f32 %v1886, 2.0
    %v2655 = vmul.f32 %v1887, 2.0
    %v2656 = vmul.f32 %v1888, 2.0
    %v2657 = vmul.f32 %v1889, 2.0
    %v2658 = vmul.f32 %v1890, 2.0
    %v2659 = vmul.f32 %v1891, 2.0
    %v2660 = vmul.f32 %v1892, 2.0
    %v2661 = vmul.f32 %v1893, 2.0
    %v2662 = vmul.f32 %v1894, 2.0
    %v2663 = vmul.f32 %v1895, 2.0
    %v2664 = vmul.f32 %v1896, 2.0
    %v2665 = vmul.f32 %v1897, 2.0
    %v2666 = vmul.f32 %v1898, 2.0
    %v2667 = vmul.f32 %v1899, 2.0
    %v2668 = vmul.f32 %v1900, 2.0
    %v2669 = vmul.f32 %v1901, 2.0
    %v2670 = vmul.f32 %v1902, 2.0
    %v2671 = vmul.f32 %v1903, 2.0
    %v2672 = vmul.f32 %v1904, 2.0
    %v2673 = vmul.f32 %v1905, 2.0
    %v2674 = vmul.f32 %v1906, 2.0
    %v2675 = vmul.f32 %v1907, 2.0
    %v2676 = vmul.f32 %v1908, 2.0
    %v2677 = vmul.f32 %v1909, 2.0
    %v2678 = vmul.f32 %v1910, 2.0
    %v2679 = vmul.f32 %v1911, 2.0
    %v2680 = vmul.f32 %v1912, 2.0
    %v2681 = vmul.f32 %v1913, 2.0
    %v2682 = vmul.f32 %v1914, 2.0
    %v2683 = vmul.f32 %v1915, 2.0
    %v2684 = vmul.f32 %v1916, 2.0
    %v2685 = vmul.f32 %v1917, 2.0
    %v2686 = vmul.f32 %v1918, 2.0
    %v2687 = vmul.f32 %v1919, 2.0
    %v2688 = vmul.f32 %v1920, 2.0
    %v2689 = vmul.f32 %v1921, 2.0
    %v2690 = vmul.f32 %v1922, 2.0
    %v2691 = vmul.f32 %v1923, 2.0
    %v2692 = vmul.f32 %v1924, 2.0
    %v2693 = vmul.f32 %v1925, 2.0
    %v2694 = vmul.f32 %v1926, 2.0
    %v2695 = vmul.f32 %v1927, 2.0
    %v2696 = vmul.f32 %v1928, 2.0
    %v2697 = vmul.f32 %v1929, 2.0
    %v2698 = vsel %vm2570, %v2634, 0.0
    %v2699 = vsel %vm2571, %v2635, 0.0
    %v2700 = vsel %vm2572, %v2636, 0.0
    %v2701 = vsel %vm2573, %v2637, 0.0
    %v2702 = vsel %vm2574, %v2638, 0.0
    %v2703 = vsel %vm2575, %v2639, 0.0
    %v2704 = vsel %vm2576, %v2640, 0.0
    %v2705 = vsel %vm2577, %v2641, 0.0
    %v2706 = vsel %vm2578, %v2642, 0.0
    %v2707 = vsel %vm2579, %v2643, 0.0
    %v2708 = vsel %vm2580, %v2644, 0.0
    %v2709 = vsel %vm2581, %v2645, 0.0
    %v2710 = vsel %vm2582, %v2646, 0.0
    %v2711 = vsel %vm2583, %v2647, 0.0
    %v2712 = vsel %vm2584, %v2648, 0.0
    %v2713 = vsel %vm2585, %v2649, 0.0
    %v2714 = vsel %vm2586, %v2650, 0.0
    %v2715 = vsel %vm2587, %v2651, 0.0
    %v2716 = vsel %vm2588, %v2652, 0.0
    %v2717 = vsel %vm2589, %v2653, 0.0
    %v2718 = vsel %vm2590, %v2654, 0.0
    %v2719 = vsel %vm2591, %v2655, 0.0
    %v2720 = vsel %vm2592, %v2656, 0.0
    %v2721 = vsel %vm2593, %v2657, 0.0
    %v2722 = vsel %vm2594, %v2658, 0.0
    %v2723 = vsel %vm2595, %v2659, 0.0
    %v2724 = vsel %vm2596, %v2660, 0.0
    %v2725 = vsel %vm2597, %v2661, 0.0
    %v2726 = vsel %vm2598, %v2662, 0.0
    %v2727 = vsel %vm2599, %v2663, 0.0
    %v2728 = vsel %vm2600, %v2664, 0.0
    %v2729 = vsel %vm2601, %v2665, 0.0
    %v2730 = vsel %vm2602, %v2666, 0.0
    %v2731 = vsel %vm2603, %v2667, 0.0
    %v2732 = vsel %vm2604, %v2668, 0.0
    %v2733 = vsel %vm2605, %v2669, 0.0
    %v2734 = vsel %vm2606, %v2670, 0.0
    %v2735 = vsel %vm2607, %v2671, 0.0
    %v2736 = vsel %vm2608, %v2672, 0.0
    %v2737 = vsel %vm2609, %v2673, 0.0
    %v2738 = vsel %vm2610, %v2674, 0.0
    %v2739 = vsel %vm2611, %v2675, 0.0
    %v2740 = vsel %vm2612, %v2676, 0.0
    %v2741 = vsel %vm2613, %v2677, 0.0
    %v2742 = vsel %vm2614, %v2678, 0.0
    %v2743 = vsel %vm2615, %v2679, 0.0
    %v2744 = vsel %vm2616, %v2680, 0.0
    %v2745 = vsel %vm2617, %v2681, 0.0
    %v2746 = vsel %vm2618, %v2682, 0.0
    %v2747 = vsel %vm2619, %v2683, 0.0
    %v2748 = vsel %vm2620, %v2684, 0.0
    %v2749 = vsel %vm2621, %v2685, 0.0
    %v2750 = vsel %vm2622, %v2686, 0.0
    %v2751 = vsel %vm2623, %v2687, 0.0
    %v2752 = vsel %vm2624, %v2688, 0.0
    %v2753 = vsel %vm2625, %v2689, 0.0
    %v2754 = vsel %vm2626, %v2690, 0.0
    %v2755 = vsel %vm2627, %v2691, 0.0
    %v2756 = vsel %vm2628, %v2692, 0.0
    %v2757 = vsel %vm2629, %v2693, 0.0
    %v2758 = vsel %vm2630, %v2694, 0.0
    %v2759 = vsel %vm2631, %v2695, 0.0
    %v2760 = vsel %vm2632, %v2696, 0.0
    %v2761 = vsel %vm2633, %v2697, 0.0
    %v2762 = vpack.c.bf16 %v2700, %v2698
    %v2763 = vpack.c.bf16 %v2701, %v2699
    %v2764 = vpack.c.bf16 %v2704, %v2702
    %v2765 = vpack.c.bf16 %v2705, %v2703
    %v2766 = vpack.c.bf16 %v2708, %v2706
    %v2767 = vpack.c.bf16 %v2709, %v2707
    %v2768 = vpack.c.bf16 %v2712, %v2710
    %v2769 = vpack.c.bf16 %v2713, %v2711
    %v2770 = vpack.c.bf16 %v2716, %v2714
    %v2771 = vpack.c.bf16 %v2717, %v2715
    %v2772 = vpack.c.bf16 %v2720, %v2718
    %v2773 = vpack.c.bf16 %v2721, %v2719
    %v2774 = vpack.c.bf16 %v2724, %v2722
    %v2775 = vpack.c.bf16 %v2725, %v2723
    %v2776 = vpack.c.bf16 %v2728, %v2726
    %v2777 = vpack.c.bf16 %v2729, %v2727
    %v2778 = vpack.c.bf16 %v2732, %v2730
    %v2779 = vpack.c.bf16 %v2733, %v2731
    %v2780 = vpack.c.bf16 %v2736, %v2734
    %v2781 = vpack.c.bf16 %v2737, %v2735
    %v2782 = vpack.c.bf16 %v2740, %v2738
    %v2783 = vpack.c.bf16 %v2741, %v2739
    %v2784 = vpack.c.bf16 %v2744, %v2742
    %v2785 = vpack.c.bf16 %v2745, %v2743
    %v2786 = vpack.c.bf16 %v2748, %v2746
    %v2787 = vpack.c.bf16 %v2749, %v2747
    %v2788 = vpack.c.bf16 %v2752, %v2750
    %v2789 = vpack.c.bf16 %v2753, %v2751
    %v2790 = vpack.c.bf16 %v2756, %v2754
    %v2791 = vpack.c.bf16 %v2757, %v2755
    %v2792 = vpack.c.bf16 %v2760, %v2758
    %v2793 = vpack.c.bf16 %v2761, %v2759
    %v2794 = vld [vmem:[%s6] sm:$0xf]
    %v2795 = vld [vmem:[%s6 + $0x4] sm:$0xf]
    %v2796 = vld [vmem:[%s6 + $0x8] sm:$0xf]
    %v2797 = vld [vmem:[%s6 + $0xc] sm:$0xf]
    %v2798 = vld [vmem:[%s6 + $0x10] sm:$0xf]
    %v2799 = vld [vmem:[%s6 + $0x14] sm:$0xf]
    %v2800 = vld [vmem:[%s6 + $0x18] sm:$0xf]
    %v2801 = vld [vmem:[%s6 + $0x1c] sm:$0xf]
    %v2802 = vld [vmem:[%s6 + $0x20] sm:$0xf]
    %v2803 = vld [vmem:[%s6 + $0x24] sm:$0xf]
    %v2804 = vld [vmem:[%s6 + $0x28] sm:$0xf]
    %v2805 = vld [vmem:[%s6 + $0x2c] sm:$0xf]
    %v2806 = vld [vmem:[%s6 + $0x30] sm:$0xf]
    %v2807 = vld [vmem:[%s6 + $0x34] sm:$0xf]
    %v2808 = vld [vmem:[%s6 + $0x38] sm:$0xf]
    %v2809 = vld [vmem:[%s6 + $0x3c] sm:$0xf]
    %v2810 = vld [vmem:[%s6 + $0x40] sm:$0xf]
    %v2811 = vld [vmem:[%s6 + $0x44] sm:$0xf]
    %v2812 = vld [vmem:[%s6 + $0x48] sm:$0xf]
    %v2813 = vld [vmem:[%s6 + $0x4c] sm:$0xf]
    %v2814 = vld [vmem:[%s6 + $0x50] sm:$0xf]
    %v2815 = vld [vmem:[%s6 + $0x54] sm:$0xf]
    %v2816 = vld [vmem:[%s6 + $0x58] sm:$0xf]
    %v2817 = vld [vmem:[%s6 + $0x5c] sm:$0xf]
    %v2818 = vld [vmem:[%s6 + $0x60] sm:$0xf]
    %v2819 = vld [vmem:[%s6 + $0x64] sm:$0xf]
    %v2820 = vld [vmem:[%s6 + $0x68] sm:$0xf]
    %v2821 = vld [vmem:[%s6 + $0x6c] sm:$0xf]
    %v2822 = vld [vmem:[%s6 + $0x70] sm:$0xf]
    %v2823 = vld [vmem:[%s6 + $0x74] sm:$0xf]
    %v2824 = vld [vmem:[%s6 + $0x78] sm:$0xf]
    %v2825 = vld [vmem:[%s6 + $0x7c] sm:$0xf]
    %v2826 = vld [vmem:[%s7] sm:$0x1]
    %v2828 = vlaneseq
    %v2829 = vshrl.u32 %v2828, 7
    %v2830 = vsub.s32 0, %v2829
    %v2831 = vrot.slane %v2826, %v2830
    %v2865 = vunpack.c.l.b16 %v2794
    %v2866 = vunpack.c.l.b16 %v2795
    %v2867 = vunpack.c.l.b16 %v2796
    %v2868 = vunpack.c.l.b16 %v2797
    %v2869 = vunpack.c.l.b16 %v2798
    %v2870 = vunpack.c.l.b16 %v2799
    %v2871 = vunpack.c.l.b16 %v2800
    %v2872 = vunpack.c.l.b16 %v2801
    %v2873 = vunpack.c.l.b16 %v2802
    %v2874 = vunpack.c.l.b16 %v2803
    %v2875 = vunpack.c.l.b16 %v2804
    %v2876 = vunpack.c.l.b16 %v2805
    %v2877 = vunpack.c.l.b16 %v2806
    %v2878 = vunpack.c.l.b16 %v2807
    %v2879 = vunpack.c.l.b16 %v2808
    %v2880 = vunpack.c.l.b16 %v2809
    %v2881 = vunpack.c.l.b16 %v2810
    %v2882 = vunpack.c.l.b16 %v2811
    %v2883 = vunpack.c.l.b16 %v2812
    %v2884 = vunpack.c.l.b16 %v2813
    %v2885 = vunpack.c.l.b16 %v2814
    %v2886 = vunpack.c.l.b16 %v2815
    %v2887 = vunpack.c.l.b16 %v2816
    %v2888 = vunpack.c.l.b16 %v2817
    %v2889 = vunpack.c.l.b16 %v2818
    %v2890 = vunpack.c.l.b16 %v2819
    %v2891 = vunpack.c.l.b16 %v2820
    %v2892 = vunpack.c.l.b16 %v2821
    %v2893 = vunpack.c.l.b16 %v2822
    %v2894 = vunpack.c.l.b16 %v2823
    %v2895 = vunpack.c.l.b16 %v2824
    %v2896 = vunpack.c.l.b16 %v2825
    %v2897 = vpack.c.b16 %v2866, %v2865
    %v2898 = vpack.c.b16 %v2868, %v2867
    %v2899 = vpack.c.b16 %v2870, %v2869
    %v2900 = vpack.c.b16 %v2872, %v2871
    %v2901 = vpack.c.b16 %v2874, %v2873
    %v2902 = vpack.c.b16 %v2876, %v2875
    %v2903 = vpack.c.b16 %v2878, %v2877
    %v2904 = vpack.c.b16 %v2880, %v2879
    %v2905 = vpack.c.b16 %v2882, %v2881
    %v2906 = vpack.c.b16 %v2884, %v2883
    %v2907 = vpack.c.b16 %v2886, %v2885
    %v2908 = vpack.c.b16 %v2888, %v2887
    %v2909 = vpack.c.b16 %v2890, %v2889
    %v2910 = vpack.c.b16 %v2892, %v2891
    %v2911 = vpack.c.b16 %v2894, %v2893
    %v2912 = vpack.c.b16 %v2896, %v2895
    %2929 = vmatprep.subr.bf16.mxu0 0
    %2930 = vmatpush1.bf16.msra.mxu0 %v2904
    %2931 = vmatprep.subr.bf16.mxu0 0
    %2932 = vmatpush1.bf16.msra.mxu0 %v2903
    %2933 = vmatprep.subr.bf16.mxu0 0
    %2934 = vmatpush1.bf16.msra.mxu0 %v2902
    %2935 = vmatprep.subr.bf16.mxu0 0
    %2936 = vmatpush1.bf16.msra.mxu0 %v2901
    %2937 = vmatprep.subr.bf16.mxu0 0
    %2938 = vmatpush1.bf16.msra.mxu0 %v2900
    %2939 = vmatprep.subr.bf16.mxu0 0
    %2940 = vmatpush1.bf16.msra.mxu0 %v2899
    %2941 = vmatprep.subr.bf16.mxu0 0
    %2942 = vmatpush1.bf16.msra.mxu0 %v2898
    %2943 = vmatprep.subr.bf16.mxu0 0
    %2944 = vmatpush1.bf16.msra.mxu0 %v2897
    %2945 = vmatprep.subr.bf16.mxu0 0
    %2946 = vmatpush2.bf16.msra.mxu0 %v2912
    %2947 = vmatprep.subr.bf16.mxu0 0
    %2948 = vmatpush2.bf16.msra.mxu0 %v2911
    %2949 = vmatprep.subr.bf16.mxu0 0
    %2950 = vmatpush2.bf16.msra.mxu0 %v2910
    %2951 = vmatprep.subr.bf16.mxu0 0
    %2952 = vmatpush2.bf16.msra.mxu0 %v2909
    %2953 = vmatprep.subr.bf16.mxu0 0
    %2954 = vmatpush2.bf16.msra.mxu0 %v2908
    %2955 = vmatprep.subr.bf16.mxu0 0
    %2956 = vmatpush2.bf16.msra.mxu0 %v2907
    %2957 = vmatprep.subr.bf16.mxu0 0
    %2958 = vmatpush2.bf16.msra.mxu0 %v2906
    %2959 = vmatprep.subr.bf16.mxu0 0
    %2960 = vmatpush2.bf16.msra.mxu0 %v2905
    %2961 = vmatprep.mubr.bf16.mxu0 %v2763
    %2962 = vmatmul.mubr.bf16.gmra.mxu0 %v2762
    %v2963 = vpop.f32.mrf.mxu0
    %v2964 = vadd.f32 %v2831, %v2963
    %v2965 = vpop.f32.mrf.mxu0
    %v2966 = vpop.f32.mrf.mxu0
    %v2967 = vadd.f32 %v2831, %v2966
    %v2968 = vpop.f32.mrf.mxu0
    %2969 = vmatprep.mubr.bf16.mxu0 %v2765
    %2970 = vmatmul.mubr.bf16.gmra.mxu0 %v2764
    %v2971 = vpop.f32.mrf.mxu0
    %v2972 = vadd.f32 %v2831, %v2971
    %v2973 = vpop.f32.mrf.mxu0
    %v2974 = vpop.f32.mrf.mxu0
    %v2975 = vadd.f32 %v2831, %v2974
    %v2976 = vpop.f32.mrf.mxu0
    %2977 = vmatprep.mubr.bf16.mxu0 %v2767
    %2978 = vmatmul.mubr.bf16.gmra.mxu0 %v2766
    %v2979 = vpop.f32.mrf.mxu0
    %v2980 = vadd.f32 %v2831, %v2979
    %v2981 = vpop.f32.mrf.mxu0
    %v2982 = vpop.f32.mrf.mxu0
    %v2983 = vadd.f32 %v2831, %v2982
    %v2984 = vpop.f32.mrf.mxu0
    %2985 = vmatprep.mubr.bf16.mxu0 %v2769
    %2986 = vmatmul.mubr.bf16.gmra.mxu0 %v2768
    %v2987 = vpop.f32.mrf.mxu0
    %v2988 = vadd.f32 %v2831, %v2987
    %v2989 = vpop.f32.mrf.mxu0
    %v2990 = vpop.f32.mrf.mxu0
    %v2991 = vadd.f32 %v2831, %v2990
    %v2992 = vpop.f32.mrf.mxu0
    %2993 = vmatprep.mubr.bf16.mxu0 %v2771
    %2994 = vmatmul.mubr.bf16.gmra.mxu0 %v2770
    %v2995 = vpop.f32.mrf.mxu0
    %v2996 = vadd.f32 %v2831, %v2995
    %v2997 = vpop.f32.mrf.mxu0
    %v2998 = vpop.f32.mrf.mxu0
    %v2999 = vadd.f32 %v2831, %v2998
    %v3000 = vpop.f32.mrf.mxu0
    %3001 = vmatprep.mubr.bf16.mxu0 %v2773
    %3002 = vmatmul.mubr.bf16.gmra.mxu0 %v2772
    %v3003 = vpop.f32.mrf.mxu0
    %v3004 = vadd.f32 %v2831, %v3003
    %v3005 = vpop.f32.mrf.mxu0
    %v3006 = vpop.f32.mrf.mxu0
    %v3007 = vadd.f32 %v2831, %v3006
    %v3008 = vpop.f32.mrf.mxu0
    %3009 = vmatprep.mubr.bf16.mxu0 %v2775
    %3010 = vmatmul.mubr.bf16.gmra.mxu0 %v2774
    %v3011 = vpop.f32.mrf.mxu0
    %v3012 = vadd.f32 %v2831, %v3011
    %v3013 = vpop.f32.mrf.mxu0
    %v3014 = vpop.f32.mrf.mxu0
    %v3015 = vadd.f32 %v2831, %v3014
    %v3016 = vpop.f32.mrf.mxu0
    %3017 = vmatprep.mubr.bf16.mxu0 %v2777
    %3018 = vmatmul.mubr.bf16.gmra.mxu0 %v2776
    %v3019 = vpop.f32.mrf.mxu0
    %v3020 = vadd.f32 %v2831, %v3019
    %v3021 = vpop.f32.mrf.mxu0
    %v3022 = vpop.f32.mrf.mxu0
    %v3023 = vadd.f32 %v2831, %v3022
    %v3024 = vpop.f32.mrf.mxu0
    %3025 = vmatprep.mubr.bf16.mxu0 %v2779
    %3026 = vmatmul.mubr.bf16.gmra.mxu0 %v2778
    %v3027 = vpop.f32.mrf.mxu0
    %v3028 = vadd.f32 %v2831, %v3027
    %v3029 = vpop.f32.mrf.mxu0
    %v3030 = vpop.f32.mrf.mxu0
    %v3031 = vadd.f32 %v2831, %v3030
    %v3032 = vpop.f32.mrf.mxu0
    %3033 = vmatprep.mubr.bf16.mxu0 %v2781
    %3034 = vmatmul.mubr.bf16.gmra.mxu0 %v2780
    %v3035 = vpop.f32.mrf.mxu0
    %v3036 = vadd.f32 %v2831, %v3035
    %v3037 = vpop.f32.mrf.mxu0
    %v3038 = vpop.f32.mrf.mxu0
    %v3039 = vadd.f32 %v2831, %v3038
    %v3040 = vpop.f32.mrf.mxu0
    %3041 = vmatprep.mubr.bf16.mxu0 %v2783
    %3042 = vmatmul.mubr.bf16.gmra.mxu0 %v2782
    %v3043 = vpop.f32.mrf.mxu0
    %v3044 = vadd.f32 %v2831, %v3043
    %v3045 = vpop.f32.mrf.mxu0
    %v3046 = vpop.f32.mrf.mxu0
    %v3047 = vadd.f32 %v2831, %v3046
    %v3048 = vpop.f32.mrf.mxu0
    %3049 = vmatprep.mubr.bf16.mxu0 %v2785
    %3050 = vmatmul.mubr.bf16.gmra.mxu0 %v2784
    %v3051 = vpop.f32.mrf.mxu0
    %v3052 = vadd.f32 %v2831, %v3051
    %v3053 = vpop.f32.mrf.mxu0
    %v3054 = vpop.f32.mrf.mxu0
    %v3055 = vadd.f32 %v2831, %v3054
    %v3056 = vpop.f32.mrf.mxu0
    %3057 = vmatprep.mubr.bf16.mxu0 %v2787
    %3058 = vmatmul.mubr.bf16.gmra.mxu0 %v2786
    %v3059 = vpop.f32.mrf.mxu0
    %v3060 = vadd.f32 %v2831, %v3059
    %v3061 = vpop.f32.mrf.mxu0
    %v3062 = vpop.f32.mrf.mxu0
    %v3063 = vadd.f32 %v2831, %v3062
    %v3064 = vpop.f32.mrf.mxu0
    %3065 = vmatprep.mubr.bf16.mxu0 %v2789
    %3066 = vmatmul.mubr.bf16.gmra.mxu0 %v2788
    %v3067 = vpop.f32.mrf.mxu0
    %v3068 = vadd.f32 %v2831, %v3067
    %v3069 = vpop.f32.mrf.mxu0
    %v3070 = vpop.f32.mrf.mxu0
    %v3071 = vadd.f32 %v2831, %v3070
    %v3072 = vpop.f32.mrf.mxu0
    %3073 = vmatprep.mubr.bf16.mxu0 %v2791
    %3074 = vmatmul.mubr.bf16.gmra.mxu0 %v2790
    %v3075 = vpop.f32.mrf.mxu0
    %v3076 = vadd.f32 %v2831, %v3075
    %v3077 = vpop.f32.mrf.mxu0
    %v3078 = vpop.f32.mrf.mxu0
    %v3079 = vadd.f32 %v2831, %v3078
    %v3080 = vpop.f32.mrf.mxu0
    %3081 = vmatprep.mubr.bf16.mxu0 %v2793
    %3082 = vmatmul.mubr.bf16.gmra.mxu0 %v2792
    %v3083 = vpop.f32.mrf.mxu0
    %v3084 = vadd.f32 %v2831, %v3083
    %v3085 = vpop.f32.mrf.mxu0
    %v3086 = vpop.f32.mrf.mxu0
    %v3087 = vadd.f32 %v2831, %v3086
    %v3088 = vpop.f32.mrf.mxu0
    %3089 = vdwg.mxu0
    %3090 = vst [vmem:[#allocation7] sm:$0xff] %v2964
    %3091 = vst [vmem:[#allocation7 + $0x8] sm:$0xff] %v2967
    %3092 = vst [vmem:[#allocation7 + $0x10] sm:$0xff] %v2972
    %3093 = vst [vmem:[#allocation7 + $0x18] sm:$0xff] %v2975
    %3094 = vst [vmem:[#allocation7 + $0x20] sm:$0xff] %v2980
    %3095 = vst [vmem:[#allocation7 + $0x28] sm:$0xff] %v2983
    %3096 = vst [vmem:[#allocation7 + $0x30] sm:$0xff] %v2988
    %3097 = vst [vmem:[#allocation7 + $0x38] sm:$0xff] %v2991
    %3098 = vst [vmem:[#allocation7 + $0x40] sm:$0xff] %v2996
    %3099 = vst [vmem:[#allocation7 + $0x48] sm:$0xff] %v2999
    %3100 = vst [vmem:[#allocation7 + $0x50] sm:$0xff] %v3004
    %3101 = vst [vmem:[#allocation7 + $0x58] sm:$0xff] %v3007
    %3102 = vst [vmem:[#allocation7 + $0x60] sm:$0xff] %v3012
    %3103 = vst [vmem:[#allocation7 + $0x68] sm:$0xff] %v3015
    %3104 = vst [vmem:[#allocation7 + $0x70] sm:$0xff] %v3020
    %3105 = vst [vmem:[#allocation7 + $0x78] sm:$0xff] %v3023
    %3106 = vst [vmem:[#allocation7 + $0x80] sm:$0xff] %v3028
    %3107 = vst [vmem:[#allocation7 + $0x88] sm:$0xff] %v3031
    %3108 = vst [vmem:[#allocation7 + $0x90] sm:$0xff] %v3036
    %3109 = vst [vmem:[#allocation7 + $0x98] sm:$0xff] %v3039
    %3110 = vst [vmem:[#allocation7 + $0xa0] sm:$0xff] %v3044
    %3111 = vst [vmem:[#allocation7 + $0xa8] sm:$0xff] %v3047
    %3112 = vst [vmem:[#allocation7 + $0xb0] sm:$0xff] %v3052
    %3113 = vst [vmem:[#allocation7 + $0xb8] sm:$0xff] %v3055
    %3114 = vst [vmem:[#allocation7 + $0xc0] sm:$0xff] %v3060
    %3115 = vst [vmem:[#allocation7 + $0xc8] sm:$0xff] %v3063
    %3116 = vst [vmem:[#allocation7 + $0xd0] sm:$0xff] %v3068
    %3117 = vst [vmem:[#allocation7 + $0xd8] sm:$0xff] %v3071
    %3118 = vst [vmem:[#allocation7 + $0xe0] sm:$0xff] %v3076
    %3119 = vst [vmem:[#allocation7 + $0xe8] sm:$0xff] %v3079
    %3120 = vst [vmem:[#allocation7 + $0xf0] sm:$0xff] %v3084
    %3121 = vst [vmem:[#allocation7 + $0xf8] sm:$0xff] %v3087
    // Predicated region
    $region34: #{tpu_custom_call.1} parent=1 // pred_check
      _
    $region35: #{tpu_custom_call.1} parent=1 // pred_check_branch
      %3123 = sbr.rel (0) target = $region37
    $region36: #{tpu_custom_call.1} parent=1 // pred_region
      %s3125 = ssub.s32 4096, 4096
      %3126 = vsyncadd [#allocation6], %s3125
      %s3127 = sshll.u32 [#allocation7], 4
      %s3128 = int_to_ptr.vmem [resolvable:$true] %s3127
      %3133 = dma.vmem_to_hbm [thread:$0]  %s3128, 4096, %s8, [#allocation6], 128, 128, 8
    $region37: #{tpu_custom_call.1} parent=1 // pred_fallthru
      _
    // Predicated region
    $region38: #{tpu_custom_call.1} parent=1 // pred_check
      _
    $region39: #{tpu_custom_call.1} parent=1 // pred_check_branch
      %3135 = sbr.rel (0) target = $region41
    $region40: #{tpu_custom_call.1} parent=1 // pred_region
      %3136 = dma.done [#allocation6], 4096
    $region41: #{tpu_custom_call.1} parent=1 // pred_fallthru
      _
    %3137 = vsyncpa [#allocation5], 1
    %3138 = vsyncpa [#allocation6], 1

</llo_original>
